<compile_context>
chip_gen: v5e
topology: v5e:2x2
jax: 0.10.0
libtpu: 0.0.40
codegen_flags: <defaults>
</compile_context>

<pallas_src>
import jax
import jax.numpy as jnp
from jax import lax
from jax.experimental import pallas as pl
from jax.experimental.pallas import tpu as pltpu


def _round_up(a: int, m: int) -> int:
    return (a + m - 1) // m * m


def _pick_k_tile(d_padded: int, cap: int) -> int:
    """Largest multiple of 128 that divides d_padded and is <= cap."""
    tk = min(cap, d_padded)
    while d_padded % tk:
        tk -= 128
    return tk


def prepare_classifier_weight(weight, dtype=jnp.bfloat16):
    """One-time weight conversion for inference (do this once at load time).

    Streaming the weight in bf16 roughly halves the dominant HBM cost of this
    weight-bandwidth-bound kernel; accumulation stays f32. Keep the original
    f32 weight if bit-parity with PyTorch `.float()` is required.
    """
    return weight.astype(dtype)


def linear_kernel(x_ref, w_ref, b_ref, o_ref):
    # x_ref: (tb, tk)   w_ref: (tn, tk)  [native nn.Linear layout, no transpose copy]
    # b_ref: (1, tn)    o_ref: (tb, tn) f32 -- doubles as the K accumulator.
    @pl.when(pl.program_id(2) == 0)
    def _init():
        # Fold the bias add into the accumulator init (no finalize pass needed).
        o_ref[...] = jnp.broadcast_to(b_ref[...], o_ref.shape)

    # Contract x's dim 1 with w's dim 1 (i.e. x @ W^T) directly on the MXU.
    # (Verified to lower without an explicit per-step XLU transpose of the
    #  weight tile — standard rhs-transposed matmul path.)
    o_ref[...] += lax.dot_general(
        x_ref[...],
        w_ref[...],
        dimension_numbers=(((1,), (1,)), ((), ())),
        preferred_element_type=jnp.float32,
    )


def linear_classifier_forward(x, weight, bias):
    """Pallas implementation of LinearClassifier.forward.

    x:      (B, C, H, W) (or any shape with leading batch dim)
    weight: (num_labels, dim) -- PyTorch nn.Linear layout, streamed in its own
            dtype (pass a bf16 weight from prepare_classifier_weight for the
            bandwidth-optimized inference path; f32 keeps exact numerics).
    bias:   (num_labels,)
    returns (B, num_labels) float32
    """
    B = x.shape[0]
    N, D = weight.shape

    # x.view(B, -1).float(); if the weight was prepared in bf16 we stream the
    # (tiny) activation in bf16 too so both MXU operands match. Single cast.
    compute_dtype = jnp.bfloat16 if weight.dtype == jnp.bfloat16 else jnp.float32
    x2d = x.reshape(B, -1).astype(compute_dtype)
    assert x2d.shape[1] == D, "weight feature dim must match flattened input dim"

    # Per-generation VMEM budget (v7x: 64 MiB physical; v5e/v6e: 128 MiB).
    try:
        vmem_cap = int(getattr(pltpu.get_tpu_info(), "vmem_capacity_bytes"))
    except Exception:  # conservative fallback (assume v7x-sized VMEM)
        vmem_cap = 64 * 1024 * 1024
    big_vmem = vmem_cap >= 96 * 1024 * 1024
    vmem_limit = min(vmem_cap * 3 // 4, 64 * 1024 * 1024)

    # Tile selection: lane-dense (multiples of 128), >=8 sublanes. tb cap of
    # 1024 keeps ceil(B/tb)==1 for realistic batches so W is read from HBM once.
    tb = min(_round_up(B, 8), 1024)
    tn = min(_round_up(N, 128), 1024)
    tk_cap = 2048 if big_vmem else 1024

    # K (reduction) axis: tk must divide the streamed D extent so no garbage
    # from a ragged K tail enters the reduction. When D is a multiple of 128
    # (common case) a divisor tile exists and NO padding of W is needed; only
    # in the rare ragged-D case do we zero-fill D on both operands.
    Dp = _round_up(D, 128)
    tk = _pick_k_tile(Dp, tk_cap)
    if Dp != D:
        # Rare path: zero fill required for reduction correctness.
        x2d = jnp.pad(x2d, ((0, 0), (0, Dp - D)))
        weight = jnp.pad(weight, ((0, 0), (0, Dp - D)))

    # Make sure v7x's two TensorCores both get grid iterations: if both
    # parallel axes would have a single step, split the N axis in two.
    if pl.cdiv(B, tb) == 1 and pl.cdiv(N, tn) == 1 and N > 128:
        tn = max(128, _round_up(pl.cdiv(N, 2), 128))

    grid = (pl.cdiv(B, tb), pl.cdiv(N, tn), Dp // tk)  # reduction (K) axis last

    bias2d = bias.astype(jnp.float32).reshape(1, N)

    cost = pl.CostEstimate(
        flops=2 * B * N * D,
        bytes_accessed=(x2d.size + weight.size) * jnp.dtype(compute_dtype).itemsize
        + (N + B * N) * 4,
        transcendentals=0,
    )

    out = pl.pallas_call(
        linear_kernel,
        out_shape=jax.ShapeDtypeStruct((B, N), jnp.float32),
        grid_spec=pltpu.PrefetchScalarGridSpec(
            num_scalar_prefetch=0,
            grid=grid,
            in_specs=[
                pl.BlockSpec((tb, tk), lambda i, j, k: (i, k)),  # x tile
                pl.BlockSpec((tn, tk), lambda i, j, k: (j, k)),  # W tile (N, D)
                pl.BlockSpec((1, tn), lambda i, j, k: (0, j)),   # bias tile
            ],
            out_specs=pl.BlockSpec((tb, tn), lambda i, j, k: (i, j)),
        ),
        compiler_params=pltpu.CompilerParams(
            dimension_semantics=("parallel", "parallel", "arbitrary"),
            vmem_limit_bytes=vmem_limit,
        ),
        cost_estimate=cost,
    )(x2d, weight, bias2d)

    return out


if __name__ == "__main__":
    # Small shapes consistent with the module: dim = C*H*W = 4*16*16 = 1024,
    # num_labels = 1000 (exercises the ragged-N boundary block), batch = 2.
    B, C, H, W = 2, 4, 16, 16
    dim = C * H * W
    num_labels = 1000

    key = jax.random.PRNGKey(0)
    kx, kw = jax.random.split(key)

    x = jax.random.normal(kx, (B, C, H, W), dtype=jnp.float32)
    # Parameter init mirroring the module's __init__: weight ~ N(0, 0.01), bias = 0.
    weight = 0.01 * jax.random.normal(kw, (num_labels, dim), dtype=jnp.float32)
    bias = jnp.zeros((num_labels,), dtype=jnp.float32)

    # Plain-JAX reference of the same math.
    ref = x.reshape(B, -1).astype(jnp.float32) @ weight.T + bias

    # 1) f32 path: bit-faithful to PyTorch x.view(B,-1).float() @ W^T + b.
    out = jax.block_until_ready(linear_classifier_forward(x, weight, bias))
    assert out.shape == (B, num_labels)
    assert jnp.allclose(out, ref, atol=1e-4, rtol=1e-4)

    # 2) bf16-streaming inference path: weight cast ONCE, persistently
    #    (amortized across calls), halving weight HBM traffic; f32 accumulation.
    weight_bf16 = jax.block_until_ready(prepare_classifier_weight(weight))
    out_bf16 = jax.block_until_ready(linear_classifier_forward(x, weight_bf16, bias))
    assert out_bf16.shape == (B, num_labels)
    assert jnp.allclose(out_bf16, ref, atol=5e-2, rtol=5e-2)

    print("KERNEL_OK")
</pallas_src>

<mosaic_0001>
module attributes {stable_mosaic.version = 11 : i64} {
  func.func @linear_kernel(%arg0: i32, %arg1: i32, %arg2: i32, %arg3: memref<8x1024xf32, #tpu.memory_space<vmem>>, %arg4: memref<512x1024xf32, #tpu.memory_space<vmem>>, %arg5: memref<1x512xf32, #tpu.memory_space<vmem>>, %arg6: memref<8x512xf32, #tpu.memory_space<vmem>>) attributes {dimension_semantics = [#tpu.dimension_semantics<parallel>, #tpu.dimension_semantics<parallel>, #tpu.dimension_semantics<arbitrary>], iteration_bounds = array<i64: 1, 2, 1>, scalar_prefetch = 0 : i64, scratch_operands = 0 : i64, tpu.core_type = #tpu.core_type<tc>, window_params = [{transform_indices = @transform_0, window_bounds = array<i64: 8, 1024>}, {transform_indices = @transform_1, window_bounds = array<i64: 512, 1024>}, {transform_indices = @transform_2, window_bounds = array<i64: 1, 512>}, {transform_indices = @transform_3, window_bounds = array<i64: 8, 512>}]} {
    %c0_i32 = arith.constant 0 : i32
    %0 = arith.cmpi eq, %arg2, %c0_i32 : i32
    %1 = arith.extui %0 : i1 to i32
    %c0_i32_0 = arith.constant 0 : i32
    %2 = arith.cmpi ne, %1, %c0_i32_0 : i32
    scf.if %2 {
      %c0_8 = arith.constant 0 : index
      %c0_9 = arith.constant 0 : index
      %9 = vector.load %arg5[%c0_8, %c0_9] : memref<1x512xf32, #tpu.memory_space<vmem>>, vector<1x512xf32>
      %10 = vector.shape_cast %9 : vector<1x512xf32> to vector<1x512xf32>
      %11 = vector.broadcast %10 : vector<1x512xf32> to vector<8x512xf32>
      %c0_10 = arith.constant 0 : index
      %c0_11 = arith.constant 0 : index
      %12 = vector.load %arg6[%c0_10, %c0_11] : memref<8x512xf32, #tpu.memory_space<vmem>>, vector<8x512xf32>
      tpu.vector_store %arg6[%c0_10, %c0_11], %11 {strides = array<i32>} : memref<8x512xf32, #tpu.memory_space<vmem>>, vector<8x512xf32>,
    } else {
    }
    %c0 = arith.constant 0 : index
    %c0_1 = arith.constant 0 : index
    %3 = vector.load %arg6[%c0, %c0_1] : memref<8x512xf32, #tpu.memory_space<vmem>>, vector<8x512xf32>
    %c0_2 = arith.constant 0 : index
    %c0_3 = arith.constant 0 : index
    %4 = vector.load %arg3[%c0_2, %c0_3] : memref<8x1024xf32, #tpu.memory_space<vmem>>, vector<8x1024xf32>
    %c0_4 = arith.constant 0 : index
    %c0_5 = arith.constant 0 : index
    %5 = vector.load %arg4[%c0_4, %c0_5] : memref<512x1024xf32, #tpu.memory_space<vmem>>, vector<512x1024xf32>
    %cst = arith.constant dense<0.000000e+00> : vector<8x512xf32>
    %6 = tpu.matmul %4, %5, %cst {dimension_numbers = #tpu.dot_dimension_numbers<[1], [1], [0], [0], [0, 0, 1, 0], [], []>} : vector<8x1024xf32>, vector<512x1024xf32>, vector<8x512xf32> -> vector<8x512xf32>
    %7 = arith.addf %3, %6 : vector<8x512xf32>
    %c0_6 = arith.constant 0 : index
    %c0_7 = arith.constant 0 : index
    %8 = vector.load %arg6[%c0_6, %c0_7] : memref<8x512xf32, #tpu.memory_space<vmem>>, vector<8x512xf32>
    tpu.vector_store %arg6[%c0_6, %c0_7], %7 {strides = array<i32>} : memref<8x512xf32, #tpu.memory_space<vmem>>, vector<8x512xf32>,
    return
  }
  func.func @transform_0(%arg0: i32, %arg1: i32, %arg2: i32) -> (i32, i32) {
    %c0_i32 = arith.constant 0 : i32
    return %arg0, %arg2 : i32, i32
  }
  func.func @transform_1(%arg0: i32, %arg1: i32, %arg2: i32) -> (i32, i32) {
    %c0_i32 = arith.constant 0 : i32
    return %arg1, %arg2 : i32, i32
  }
  func.func @transform_2(%arg0: i32, %arg1: i32, %arg2: i32) -> (i32, i32) {
    %c0_i32 = arith.constant 0 : i32
    %c0_i32_0 = arith.constant 0 : i32
    return %c0_i32, %arg1 : i32, i32
  }
  func.func @transform_3(%arg0: i32, %arg1: i32, %arg2: i32) -> (i32, i32) {
    %c0_i32 = arith.constant 0 : i32
    return %arg0, %arg1 : i32, i32
  }
}

</mosaic_0001>

<llo_original>
// kernel: tpu_custom_call.1
$region0: #{tpu_custom_call.1}
  #allocation0 [shape = 'u32[]', space=smem, size = 0x4, offset = 0x4, fixed_abs, tag = 'smem constant byte address 0x4 - core index']
  #allocation1 [shape = 'u32[72,128]{1,0:T(1,128)}', space=vmem, size = 0x9000, scoped, tag = 'internal scratch']
  %s0 = inlined_call_operand.hbm [shape: f32[2,1024], index: 0, kind: input, shape index: {}]
  %s1 = inlined_call_operand.hbm [shape: f32[1000,1024], index: 1, kind: input, shape index: {}]
  %s2 = inlined_call_operand.hbm [shape: f32[1,1000], index: 2, kind: input, shape index: {}]
  %s3 = inlined_call_operand.hbm [shape: f32[2,1000], index: 3, kind: output, shape index: {}]
  %s4 = sld [smem:[#allocation0]]
  $region61: #{tpu_custom_call.1} parent=0
    _
  %s6 = ssub.s32 1, %s4
  %s7 = scalar_select 0, %s6, %s4
  $region1: #{tpu_custom_call.1} parent=0
    #allocation2 [shape = 'u8[32768]{0}', space=vmem, size = 0x8000, scoped, tag = 'input window, operand 0, single buffered']
    #allocation3 [shape = 's32[2]{0}', space=sflag, size = 0x8, scoped, tag = 'scoped memory for tpu_custom_call.1']
    #allocation4 [shape = 's32[2]{0}', space=sflag, size = 0x8, scoped, tag = 'scoped memory for tpu_custom_call.1']
    #allocation5 [shape = 'u8[4194304]{0}', space=vmem, size = 0x400000, scoped, tag = 'input window, operand 1']
    #allocation6 [shape = 's32[2]{0}', space=sflag, size = 0x8, scoped, tag = 'scoped memory for tpu_custom_call.1']
    #allocation7 [shape = 'u8[4096]{0}', space=vmem, size = 0x1000, scoped, tag = 'input window, operand 2']
    #allocation8 [shape = 'u8[32768]{0}', space=vmem, size = 0x8000, scoped, tag = 'output window, operand 0']
    %8 = vsyncpa [#allocation3], 0
    %9 = vsyncpa [#allocation6], 0
    %s10 = scalar_lea.sflag [#allocation6], 1
    %11 = vsyncpa %s10, 0
    %12 = vsyncpa [#allocation4], 0
    %s13 = scalar_lea.sflag [#allocation4], 1
    %14 = vsyncpa %s13, 0
    loop: start=0, step=1, limit=4
    $region2: #{tpu_custom_call.1} parent=1 // loop_pre_header
      _
    $region3: #{tpu_custom_call.1} parent=1 // loop_header
      %s16 = sphi 0, %s20
      %p17 = scmp.ge.s32.totalorder %s16, 4
      %s23 = sphi 0, %s42
      %s24 = sphi 0, %s38
      %s25 = sphi 0, %s34
      %s26 = sphi 0, %s23
      %s27 = sphi 0, %s24
      %s28 = sphi 0, %s25
      %s29 = sphi 0, %s26
      %s30 = sphi 0, %s27
      %s31 = sphi 0, %s28
      %s47 = sphi 0, %s49
      %s50 = sphi 0, %s47
      %s51 = sphi 0, %s50
      %s67 = sphi 0, %s51
      %s75 = sphi 0, %s77
      %s78 = sphi 0, %s75
      %s79 = sphi 0, %s78
      %s95 = sphi 0, %s79
      %s101 = sphi 0, %s103
      %s104 = sphi 0, %s101
      %s105 = sphi 0, %s104
      %s121 = sphi 0, %s105
      %s129 = sphi 0, %s131
      %s132 = sphi 0, %s129
      %s133 = sphi 0, %s132
      %s149 = sphi 0, %s133
    $region4: #{tpu_custom_call.1} parent=1 // loop_header_branch
      %19 = sbr.rel (%p17) target = $region8
    $region5: #{tpu_custom_call.1} parent=1 // loop_body
      %s21 = ssub.s32 %s16, 1
      %s22 = ssub.s32 %s16, 2
      %s32 = sadd.s32 1, %s25
      %p33 = scmp.ge.s32.totalorder %s32, 1
      %s34 = scalar_select %p33, 0, %s32
      %s35 = sadd.s32 1, %s24
      %s36 = scalar_select %p33, %s35, %s24
      %p37 = scmp.ge.s32.totalorder %s36, 2
      %s38 = scalar_select %p37, 0, %s36
      %s39 = sadd.s32 1, %s23
      %s40 = scalar_select %p37, %s39, %s23
      %p41 = scmp.ge.s32.totalorder %s40, 1
      %s42 = scalar_select %p41, 0, %s40
      %s43 = ssub.s32 %s23, %s42
      %s44 = ssub.s32 %s25, %s34
      %s45 = sor.u32 %s43, %s44
      %p46 = scmp.eq.s32.totalorder %s45, 0
      %s48 = sadd.s32 %s47, 1
      %s49 = scalar_select %p46, %s47, %s48
      %p52 = pneg %p46
      %p53 = scmp.eq.s32.totalorder %s16, 1
      %p54 = por %p52, %p53
      %p55 = scmp.ne.s32.totalorder %s47, %s50
      %p56 = scmp.eq.s32.totalorder %s16, 0
      %p57 = por %p55, %p56
      %p58 = scmp.ne.s32.totalorder %s47, %s50
      %p59 = scmp.eq.s32.totalorder %s21, 1
      %p60 = por %p58, %p59
      %p61 = scmp.ne.s32.totalorder %s50, %s51
      %p62 = scmp.eq.s32.totalorder %s21, 0
      %p63 = por %p61, %p62
      %p64 = scmp.ne.s32.totalorder %s50, %s51
      %p65 = scmp.eq.s32.totalorder %s22, 1
      %p66 = por %p64, %p65
      %p68 = scmp.ne.s32.totalorder %s51, %s67
      %p69 = scmp.eq.s32.totalorder %s22, 0
      %p70 = por %p68, %p69
      %s71 = ssub.s32 %s24, %s38
      %s72 = ssub.s32 %s25, %s34
      %s73 = sor.u32 %s71, %s72
      %p74 = scmp.eq.s32.totalorder %s73, 0
      %s76 = sadd.s32 %s75, 1
      %s77 = scalar_select %p74, %s75, %s76
      %p80 = pneg %p74
      %p81 = scmp.eq.s32.totalorder %s16, 1
      %p82 = por %p80, %p81
      %p83 = scmp.ne.s32.totalorder %s75, %s78
      %p84 = scmp.eq.s32.totalorder %s16, 0
      %p85 = por %p83, %p84
      %p86 = scmp.ne.s32.totalorder %s75, %s78
      %p87 = scmp.eq.s32.totalorder %s21, 1
      %p88 = por %p86, %p87
      %p89 = scmp.ne.s32.totalorder %s78, %s79
      %p90 = scmp.eq.s32.totalorder %s21, 0
      %p91 = por %p89, %p90
      %p92 = scmp.ne.s32.totalorder %s78, %s79
      %p93 = scmp.eq.s32.totalorder %s22, 1
      %p94 = por %p92, %p93
      %p96 = scmp.ne.s32.totalorder %s79, %s95
      %p97 = scmp.eq.s32.totalorder %s22, 0
      %p98 = por %p96, %p97
      %s99 = ssub.s32 %s24, %s38
      %p100 = scmp.eq.s32.totalorder %s99, 0
      %s102 = sadd.s32 %s101, 1
      %s103 = scalar_select %p100, %s101, %s102
      %p106 = pneg %p100
      %p107 = scmp.eq.s32.totalorder %s16, 1
      %p108 = por %p106, %p107
      %p109 = scmp.ne.s32.totalorder %s101, %s104
      %p110 = scmp.eq.s32.totalorder %s16, 0
      %p111 = por %p109, %p110
      %p112 = scmp.ne.s32.totalorder %s101, %s104
      %p113 = scmp.eq.s32.totalorder %s21, 1
      %p114 = por %p112, %p113
      %p115 = scmp.ne.s32.totalorder %s104, %s105
      %p116 = scmp.eq.s32.totalorder %s21, 0
      %p117 = por %p115, %p116
      %p118 = scmp.ne.s32.totalorder %s104, %s105
      %p119 = scmp.eq.s32.totalorder %s22, 1
      %p120 = por %p118, %p119
      %p122 = scmp.ne.s32.totalorder %s105, %s121
      %p123 = scmp.eq.s32.totalorder %s22, 0
      %p124 = por %p122, %p123
      %s125 = ssub.s32 %s23, %s42
      %s126 = ssub.s32 %s24, %s38
      %s127 = sor.u32 %s125, %s126
      %p128 = scmp.eq.s32.totalorder %s127, 0
      %s130 = sadd.s32 %s129, 1
      %s131 = scalar_select %p128, %s129, %s130
      %p134 = pneg %p128
      %p135 = scmp.eq.s32.totalorder %s16, 1
      %p136 = por %p134, %p135
      %p137 = scmp.ne.s32.totalorder %s129, %s132
      %p138 = scmp.eq.s32.totalorder %s16, 0
      %p139 = por %p137, %p138
      %p140 = scmp.ne.s32.totalorder %s129, %s132
      %p141 = scmp.eq.s32.totalorder %s21, 1
      %p142 = por %p140, %p141
      %p143 = scmp.ne.s32.totalorder %s132, %s133
      %p144 = scmp.eq.s32.totalorder %s21, 0
      %p145 = por %p143, %p144
      %p146 = scmp.ne.s32.totalorder %s132, %s133
      %p147 = scmp.eq.s32.totalorder %s22, 1
      %p148 = por %p146, %p147
      %p150 = scmp.ne.s32.totalorder %s133, %s149
      %p151 = scmp.eq.s32.totalorder %s22, 0
      %p152 = por %p150, %p151
      %p153 = scmp.le.s32.totalorder 1, %s16
      %p154 = scmp.lt.s32.totalorder %s16, 3
      %p155 = pnand %p153, %p154
      %p156 = pneg %p155
      // Predicated region
      $region9: #{tpu_custom_call.1} parent=5 // pred_check
        _
      $region10: #{tpu_custom_call.1} parent=5 // pred_check_branch
        %158 = sbr.rel (%p155) target = $region12
      $region11: #{tpu_custom_call.1} parent=5 // pred_region
        %s159 = ssub.s32 %s16, 1
        // Predicated region
        $region13: #{tpu_custom_call.1} parent=11 // pred_check
          %p160 = pneg %p63
        $region14: #{tpu_custom_call.1} parent=11 // pred_check_branch
          %162 = sbr.rel (%p160) target = $region16
        $region15: #{tpu_custom_call.1} parent=11 // pred_region
          %s163 = smul.u32 4, %s26
          %s164 = smul.u32 8, %s28
          %s165 = ssub.s32 1, %s163
          %s166 = smul.u32 2, %s165
          %s167 = smul.u32 %s166, 8
          %s168 = ssub.s32 64, %s167
          %s169 = sshll.u32 %s168, 4
          %170 = vsyncadd [#allocation3], %s169
          %p171 = scmp.ne.s32.totalorder 0, %s167
          %s172 = smul.addr %s163, 8
          %s173 = sadd.s32 %s164, %s172
          %s174 = smul.addr %s173, 2
          %s175 = scalar_lea.hbm %s0, %s174
          %s176 = smul.u32 16, %s165
          %s177 = sshll.u32 %s175, 4
          %s178 = int_to_ptr.hbm [resolvable:$true] %s177
          %s179 = sshll.u32 [#allocation2], 4
          %s180 = int_to_ptr.vmem [resolvable:$true] %s179
          %s181 = sshll.u32 %s176, 4
          %185 = dma.hbm_to_vmem [thread:$0]  (%p171), %s178, %s181, %s180, [#allocation3], 256, 256, 16
        $region16: #{tpu_custom_call.1} parent=11 // pred_fallthru
          _
      $region12: #{tpu_custom_call.1} parent=5 // pred_fallthru
        _
      %p186 = scmp.lt.s32.totalorder %s16, 2
      // Predicated region
      $region17: #{tpu_custom_call.1} parent=5 // pred_check
        %p187 = pneg %p186
      $region18: #{tpu_custom_call.1} parent=5 // pred_check_branch
        %189 = sbr.rel (%p187) target = $region20
      $region19: #{tpu_custom_call.1} parent=5 // pred_region
        // Predicated region
        $region21: #{tpu_custom_call.1} parent=19 // pred_check
          %p190 = pneg %p85
        $region22: #{tpu_custom_call.1} parent=19 // pred_check_branch
          %192 = sbr.rel (%p190) target = $region24
        $region23: #{tpu_custom_call.1} parent=19 // pred_region
          %s193 = sand.u32 %s16, 1
          %s194 = scalar_lea.sflag [#allocation6], %s193
          %s195 = sand.u32 %s75, 1
          %s196 = smul.addr %s195, 4096
          %s197 = scalar_lea.vmem [#allocation5], %s196
          %s198 = smul.u32 64, %s24
          %s199 = smul.u32 8, %s25
          %s200 = ssub.s32 125, %s198
          %p201 = scmp.lt.s32.totalorder %s200, 64
          %s202 = scalar_select %p201, %s200, 64
          %s203 = smul.u32 8, %s202
          %s204 = smul.u32 %s203, 8
          %s205 = ssub.s32 4096, %s204
          %s206 = sshll.u32 %s205, 4
          %207 = vsyncadd %s194, %s206
          %p208 = scmp.ne.s32.totalorder 0, %s204
          %s209 = smul.addr %s198, 8
          %s210 = sadd.s32 %s199, %s209
          %s211 = smul.addr %s210, 8
          %s212 = scalar_lea.hbm %s1, %s211
          %s213 = smul.u32 64, %s202
          %s214 = sshll.u32 %s212, 4
          %s215 = int_to_ptr.hbm [resolvable:$true] %s214
          %s216 = sshll.u32 %s197, 4
          %s217 = int_to_ptr.vmem [resolvable:$true] %s216
          %s218 = sshll.u32 %s213, 4
          %222 = dma.hbm_to_vmem [thread:$0]  (%p208), %s215, %s218, %s217, %s194, 1024, 1024, 64
        $region24: #{tpu_custom_call.1} parent=19 // pred_fallthru
          _
        // Predicated region
        $region25: #{tpu_custom_call.1} parent=19 // pred_check
          %p223 = pneg %p111
        $region26: #{tpu_custom_call.1} parent=19 // pred_check_branch
          %225 = sbr.rel (%p223) target = $region28
        $region27: #{tpu_custom_call.1} parent=19 // pred_region
          %s226 = sand.u32 %s16, 1
          %s227 = scalar_lea.sflag [#allocation6], %s226
          %s228 = sand.u32 %s101, 1
          %s229 = smul.addr %s228, 4
          %s230 = scalar_lea.vmem [#allocation7], %s229
          %s231 = smul.u32 4, %s24
          %233 = vsyncadd %s227, 0
          %s234 = scalar_lea.hbm %s2, %s231
          %s236 = sshll.u32 %s234, 4
          %s237 = int_to_ptr.hbm [resolvable:$true] %s236
          %s238 = sshll.u32 %s230, 4
          %s239 = int_to_ptr.vmem [resolvable:$true] %s238
          %241 = dma.hbm_to_vmem [thread:$0]  %s237, 64, %s239, %s227
        $region28: #{tpu_custom_call.1} parent=19 // pred_fallthru
          _
      $region20: #{tpu_custom_call.1} parent=5 // pred_fallthru
        _
      %p242 = scmp.le.s32.totalorder 1, %s16
      %p243 = scmp.lt.s32.totalorder %s16, 3
      %p244 = pnand %p242, %p243
      %p245 = pneg %p244
      // Predicated region
      $region29: #{tpu_custom_call.1} parent=5 // pred_check
        _
      $region30: #{tpu_custom_call.1} parent=5 // pred_check_branch
        %247 = sbr.rel (%p244) target = $region32
      $region31: #{tpu_custom_call.1} parent=5 // pred_region
        %s248 = ssub.s32 %s16, 1
        // Predicated region
        $region33: #{tpu_custom_call.1} parent=31 // pred_check
          %p249 = pneg %p63
        $region34: #{tpu_custom_call.1} parent=31 // pred_check_branch
          %251 = sbr.rel (%p249) target = $region36
        $region35: #{tpu_custom_call.1} parent=31 // pred_region
          %253 = dma.done [#allocation3], 1024
        $region36: #{tpu_custom_call.1} parent=31 // pred_fallthru
          _
        %s254 = sand.u32 %s21, 1
        %s255 = scalar_lea.sflag [#allocation6], %s254
        %s256 = sand.u32 %s78, 1
        %s257 = smul.addr %s256, 4096
        %s258 = scalar_lea.vmem [#allocation5], %s257
        // Predicated region
        $region37: #{tpu_custom_call.1} parent=31 // pred_check
          %p259 = pneg %p91
        $region38: #{tpu_custom_call.1} parent=31 // pred_check_branch
          %261 = sbr.rel (%p259) target = $region40
        $region39: #{tpu_custom_call.1} parent=31 // pred_region
          %263 = dma.done %s255, 65536
        $region40: #{tpu_custom_call.1} parent=31 // pred_fallthru
          _
        %s264 = sand.u32 %s21, 1
        %s265 = scalar_lea.sflag [#allocation6], %s264
        %s266 = sand.u32 %s104, 1
        %s267 = smul.addr %s266, 4
        %s268 = scalar_lea.vmem [#allocation7], %s267
        // Predicated region
        $region41: #{tpu_custom_call.1} parent=31 // pred_check
          %p269 = pneg %p117
        $region42: #{tpu_custom_call.1} parent=31 // pred_check_branch
          %271 = sbr.rel (%p269) target = $region44
        $region43: #{tpu_custom_call.1} parent=31 // pred_region
          %273 = dma.done %s265, 64
        $region44: #{tpu_custom_call.1} parent=31 // pred_fallthru
          _
        %p274 = pneg %p63
        %p275 = pneg %p60
        %s276 = sand.u32 %s21, 1
        %s277 = scalar_lea.sflag [#allocation6], %s276
        %s278 = sand.u32 %s78, 1
        %s279 = smul.addr %s278, 4096
        %s280 = scalar_lea.vmem [#allocation5], %s279
        %p281 = pneg %p91
        %p282 = pneg %p88
        %s283 = sand.u32 %s21, 1
        %s284 = scalar_lea.sflag [#allocation6], %s283
        %s285 = sand.u32 %s104, 1
        %s286 = smul.addr %s285, 4
        %s287 = scalar_lea.vmem [#allocation7], %s286
        %p288 = pneg %p117
        %p289 = pneg %p114
        %p290 = pneg %p145
        %p291 = pneg %p142
        %s292 = sand.u32 %s132, 1
        %s293 = scalar_lea.sflag [#allocation4], %s292
        %s294 = sand.u32 %s132, 1
        %s295 = smul.addr %s294, 32
        %s296 = scalar_lea.vmem [#allocation8], %s295
        %s297 = smul.u32 4, %s26
        %s298 = smul.u32 8, %s28
        %s299 = ssub.s32 1, %s297
        %s300 = smul.u32 2, %s299
        %s301 = smul.u32 %s300, 8
        %s302 = smul.u32 64, %s27
        %s303 = smul.u32 8, %s28
        %s304 = ssub.s32 125, %s302
        %p305 = scmp.lt.s32.totalorder %s304, 64
        %s306 = scalar_select %p305, %s304, 64
        %s307 = smul.u32 8, %s306
        %s308 = smul.u32 %s307, 8
        %s309 = smul.u32 4, %s27
        %s310 = smul.u32 4, %s26
        %s311 = smul.u32 4, %s27
        %s312 = ssub.s32 1, %s310
        %s313 = smul.u32 2, %s312
        %s314 = smul.u32 %s313, 4
        %p315 = scmp.eq.s32.totalorder %s28, 0
        // Predicated region
        $region45: #{tpu_custom_call.1} parent=31 // pred_check
          %p316 = pneg %p315
        $region46: #{tpu_custom_call.1} parent=31 // pred_check_branch
          %318 = sbr.rel (%p316) target = $region48
        $region47: #{tpu_custom_call.1} parent=31 // pred_region
          %v319 = vld [vmem:[%s268] sm:$0xf]
          %v321 = vperm.slane %v319, 0
          %v322 = vperm.slane %v319, 1
          %v323 = vperm.slane %v319, 2
          %v324 = vperm.slane %v319, 3
          %v325 = vrot.slane %v322, 6
          %v326 = vrot.slane %v323, 4
          %v327 = vrot.slane %v324, 2
          %vm328 = vcmask 1041408
          %v329 = vsel %vm328, %v321, %v325
          %vm330 = vcmask 1045508
          %v331 = vsel %vm330, %v326, %v327
          %vm332 = vcmask 1043456
          %v333 = vsel %vm332, %v329, %v331
          %vm334 = vcmask 1043458
          %v335 = vsel %vm334, %v321, %v325
          %vm336 = vcmask 1045504
          %v337 = vsel %vm336, %v327, %v326
          %vm338 = vcmask 1045506
          %v339 = vsel %vm338, %v335, %v337
          %v340 = vrot.slane %v339, 2
          %v341 = vsel %vm330, %v321, %v325
          %v342 = vsel %vm328, %v326, %v327
          %v343 = vsel %vm332, %v342, %v341
          %v344 = vrot.slane %v343, 4
          %v345 = vsel %vm336, %v325, %v321
          %v346 = vsel %vm334, %v326, %v327
          %v347 = vsel %vm338, %v346, %v345
          %v348 = vrot.slane %v347, 6
          %353 = vst [vmem:[%s296] sm:$0xff] %v333
          %354 = vst [vmem:[%s296 + $0x8] sm:$0xff] %v340
          %355 = vst [vmem:[%s296 + $0x10] sm:$0xff] %v344
          %356 = vst [vmem:[%s296 + $0x18] sm:$0xff] %v348
        $region48: #{tpu_custom_call.1} parent=31 // pred_fallthru
          _
        %v357 = vld [vmem:[%s296] sm:$0xff]
        %v358 = vld [vmem:[%s296 + $0x8] sm:$0xff]
        %v359 = vld [vmem:[%s296 + $0x10] sm:$0xff]
        %v360 = vld [vmem:[%s296 + $0x18] sm:$0xff]
        %v361 = vld [vmem:[#allocation2] sm:$0xff]
        %v362 = vld [vmem:[#allocation2 + $0x8] sm:$0xff]
        %v363 = vld [vmem:[#allocation2 + $0x10] sm:$0xff]
        %v364 = vld [vmem:[#allocation2 + $0x18] sm:$0xff]
        %v365 = vld [vmem:[#allocation2 + $0x20] sm:$0xff]
        %v366 = vld [vmem:[#allocation2 + $0x28] sm:$0xff]
        %v367 = vld [vmem:[#allocation2 + $0x30] sm:$0xff]
        %v368 = vld [vmem:[#allocation2 + $0x38] sm:$0xff]
        %v369 = vld [vmem:[%s258] sm:$0xff]
        %v370 = vld [vmem:[%s258 + $0x8] sm:$0xff]
        %v371 = vld [vmem:[%s258 + $0x10] sm:$0xff]
        %v372 = vld [vmem:[%s258 + $0x18] sm:$0xff]
        %v373 = vld [vmem:[%s258 + $0x20] sm:$0xff]
        %v374 = vld [vmem:[%s258 + $0x28] sm:$0xff]
        %v375 = vld [vmem:[%s258 + $0x30] sm:$0xff]
        %v376 = vld [vmem:[%s258 + $0x38] sm:$0xff]
        %v377 = vld [vmem:[%s258 + $0x40] sm:$0xff]
        %v378 = vld [vmem:[%s258 + $0x48] sm:$0xff]
        %v379 = vld [vmem:[%s258 + $0x50] sm:$0xff]
        %v380 = vld [vmem:[%s258 + $0x58] sm:$0xff]
        %v381 = vld [vmem:[%s258 + $0x60] sm:$0xff]
        %v382 = vld [vmem:[%s258 + $0x68] sm:$0xff]
        %v383 = vld [vmem:[%s258 + $0x70] sm:$0xff]
        %v384 = vld [vmem:[%s258 + $0x78] sm:$0xff]
        %v385 = vld [vmem:[%s258 + $0x80] sm:$0xff]
        %v386 = vld [vmem:[%s258 + $0x88] sm:$0xff]
        %v387 = vld [vmem:[%s258 + $0x90] sm:$0xff]
        %v388 = vld [vmem:[%s258 + $0x98] sm:$0xff]
        %v389 = vld [vmem:[%s258 + $0xa0] sm:$0xff]
        %v390 = vld [vmem:[%s258 + $0xa8] sm:$0xff]
        %v391 = vld [vmem:[%s258 + $0xb0] sm:$0xff]
        %v392 = vld [vmem:[%s258 + $0xb8] sm:$0xff]
        %v393 = vld [vmem:[%s258 + $0xc0] sm:$0xff]
        %v394 = vld [vmem:[%s258 + $0xc8] sm:$0xff]
        %v395 = vld [vmem:[%s258 + $0xd0] sm:$0xff]
        %v396 = vld [vmem:[%s258 + $0xd8] sm:$0xff]
        %v397 = vld [vmem:[%s258 + $0xe0] sm:$0xff]
        %v398 = vld [vmem:[%s258 + $0xe8] sm:$0xff]
        %v399 = vld [vmem:[%s258 + $0xf0] sm:$0xff]
        %v400 = vld [vmem:[%s258 + $0xf8] sm:$0xff]
        %v401 = vld [vmem:[%s258 + $0x100] sm:$0xff]
        %v402 = vld [vmem:[%s258 + $0x108] sm:$0xff]
        %v403 = vld [vmem:[%s258 + $0x110] sm:$0xff]
        %v404 = vld [vmem:[%s258 + $0x118] sm:$0xff]
        %v405 = vld [vmem:[%s258 + $0x120] sm:$0xff]
        %v406 = vld [vmem:[%s258 + $0x128] sm:$0xff]
        %v407 = vld [vmem:[%s258 + $0x130] sm:$0xff]
        %v408 = vld [vmem:[%s258 + $0x138] sm:$0xff]
        %v409 = vld [vmem:[%s258 + $0x140] sm:$0xff]
        %v410 = vld [vmem:[%s258 + $0x148] sm:$0xff]
        %v411 = vld [vmem:[%s258 + $0x150] sm:$0xff]
        %v412 = vld [vmem:[%s258 + $0x158] sm:$0xff]
        %v413 = vld [vmem:[%s258 + $0x160] sm:$0xff]
        %v414 = vld [vmem:[%s258 + $0x168] sm:$0xff]
        %v415 = vld [vmem:[%s258 + $0x170] sm:$0xff]
        %v416 = vld [vmem:[%s258 + $0x178] sm:$0xff]
        %v417 = vld [vmem:[%s258 + $0x180] sm:$0xff]
        %v418 = vld [vmem:[%s258 + $0x188] sm:$0xff]
        %v419 = vld [vmem:[%s258 + $0x190] sm:$0xff]
        %v420 = vld [vmem:[%s258 + $0x198] sm:$0xff]
        %v421 = vld [vmem:[%s258 + $0x1a0] sm:$0xff]
        %v422 = vld [vmem:[%s258 + $0x1a8] sm:$0xff]
        %v423 = vld [vmem:[%s258 + $0x1b0] sm:$0xff]
        %v424 = vld [vmem:[%s258 + $0x1b8] sm:$0xff]
        %v425 = vld [vmem:[%s258 + $0x1c0] sm:$0xff]
        %v426 = vld [vmem:[%s258 + $0x1c8] sm:$0xff]
        %v427 = vld [vmem:[%s258 + $0x1d0] sm:$0xff]
        %v428 = vld [vmem:[%s258 + $0x1d8] sm:$0xff]
        %v429 = vld [vmem:[%s258 + $0x1e0] sm:$0xff]
        %v430 = vld [vmem:[%s258 + $0x1e8] sm:$0xff]
        %v431 = vld [vmem:[%s258 + $0x1f0] sm:$0xff]
        %v432 = vld [vmem:[%s258 + $0x1f8] sm:$0xff]
        %v433 = vld [vmem:[%s258 + $0x200] sm:$0xff]
        %v434 = vld [vmem:[%s258 + $0x208] sm:$0xff]
        %v435 = vld [vmem:[%s258 + $0x210] sm:$0xff]
        %v436 = vld [vmem:[%s258 + $0x218] sm:$0xff]
        %v437 = vld [vmem:[%s258 + $0x220] sm:$0xff]
        %v438 = vld [vmem:[%s258 + $0x228] sm:$0xff]
        %v439 = vld [vmem:[%s258 + $0x230] sm:$0xff]
        %v440 = vld [vmem:[%s258 + $0x238] sm:$0xff]
        %v441 = vld [vmem:[%s258 + $0x240] sm:$0xff]
        %v442 = vld [vmem:[%s258 + $0x248] sm:$0xff]
        %v443 = vld [vmem:[%s258 + $0x250] sm:$0xff]
        %v444 = vld [vmem:[%s258 + $0x258] sm:$0xff]
        %v445 = vld [vmem:[%s258 + $0x260] sm:$0xff]
        %v446 = vld [vmem:[%s258 + $0x268] sm:$0xff]
        %v447 = vld [vmem:[%s258 + $0x270] sm:$0xff]
        %v448 = vld [vmem:[%s258 + $0x278] sm:$0xff]
        %v449 = vld [vmem:[%s258 + $0x280] sm:$0xff]
        %v450 = vld [vmem:[%s258 + $0x288] sm:$0xff]
        %v451 = vld [vmem:[%s258 + $0x290] sm:$0xff]
        %v452 = vld [vmem:[%s258 + $0x298] sm:$0xff]
        %v453 = vld [vmem:[%s258 + $0x2a0] sm:$0xff]
        %v454 = vld [vmem:[%s258 + $0x2a8] sm:$0xff]
        %v455 = vld [vmem:[%s258 + $0x2b0] sm:$0xff]
        %v456 = vld [vmem:[%s258 + $0x2b8] sm:$0xff]
        %v457 = vld [vmem:[%s258 + $0x2c0] sm:$0xff]
        %v458 = vld [vmem:[%s258 + $0x2c8] sm:$0xff]
        %v459 = vld [vmem:[%s258 + $0x2d0] sm:$0xff]
        %v460 = vld [vmem:[%s258 + $0x2d8] sm:$0xff]
        %v461 = vld [vmem:[%s258 + $0x2e0] sm:$0xff]
        %v462 = vld [vmem:[%s258 + $0x2e8] sm:$0xff]
        %v463 = vld [vmem:[%s258 + $0x2f0] sm:$0xff]
        %v464 = vld [vmem:[%s258 + $0x2f8] sm:$0xff]
        %v465 = vld [vmem:[%s258 + $0x300] sm:$0xff]
        %v466 = vld [vmem:[%s258 + $0x308] sm:$0xff]
        %v467 = vld [vmem:[%s258 + $0x310] sm:$0xff]
        %v468 = vld [vmem:[%s258 + $0x318] sm:$0xff]
        %v469 = vld [vmem:[%s258 + $0x320] sm:$0xff]
        %v470 = vld [vmem:[%s258 + $0x328] sm:$0xff]
        %v471 = vld [vmem:[%s258 + $0x330] sm:$0xff]
        %v472 = vld [vmem:[%s258 + $0x338] sm:$0xff]
        %v473 = vld [vmem:[%s258 + $0x340] sm:$0xff]
        %v474 = vld [vmem:[%s258 + $0x348] sm:$0xff]
        %v475 = vld [vmem:[%s258 + $0x350] sm:$0xff]
        %v476 = vld [vmem:[%s258 + $0x358] sm:$0xff]
        %v477 = vld [vmem:[%s258 + $0x360] sm:$0xff]
        %v478 = vld [vmem:[%s258 + $0x368] sm:$0xff]
        %v479 = vld [vmem:[%s258 + $0x370] sm:$0xff]
        %v480 = vld [vmem:[%s258 + $0x378] sm:$0xff]
        %v481 = vld [vmem:[%s258 + $0x380] sm:$0xff]
        %v482 = vld [vmem:[%s258 + $0x388] sm:$0xff]
        %v483 = vld [vmem:[%s258 + $0x390] sm:$0xff]
        %v484 = vld [vmem:[%s258 + $0x398] sm:$0xff]
        %v485 = vld [vmem:[%s258 + $0x3a0] sm:$0xff]
        %v486 = vld [vmem:[%s258 + $0x3a8] sm:$0xff]
        %v487 = vld [vmem:[%s258 + $0x3b0] sm:$0xff]
        %v488 = vld [vmem:[%s258 + $0x3b8] sm:$0xff]
        %v489 = vld [vmem:[%s258 + $0x3c0] sm:$0xff]
        %v490 = vld [vmem:[%s258 + $0x3c8] sm:$0xff]
        %v491 = vld [vmem:[%s258 + $0x3d0] sm:$0xff]
        %v492 = vld [vmem:[%s258 + $0x3d8] sm:$0xff]
        %v493 = vld [vmem:[%s258 + $0x3e0] sm:$0xff]
        %v494 = vld [vmem:[%s258 + $0x3e8] sm:$0xff]
        %v495 = vld [vmem:[%s258 + $0x3f0] sm:$0xff]
        %v496 = vld [vmem:[%s258 + $0x3f8] sm:$0xff]
        %v497 = vld [vmem:[%s258 + $0x400] sm:$0xff]
        %v498 = vld [vmem:[%s258 + $0x408] sm:$0xff]
        %v499 = vld [vmem:[%s258 + $0x410] sm:$0xff]
        %v500 = vld [vmem:[%s258 + $0x418] sm:$0xff]
        %v501 = vld [vmem:[%s258 + $0x420] sm:$0xff]
        %v502 = vld [vmem:[%s258 + $0x428] sm:$0xff]
        %v503 = vld [vmem:[%s258 + $0x430] sm:$0xff]
        %v504 = vld [vmem:[%s258 + $0x438] sm:$0xff]
        %v505 = vld [vmem:[%s258 + $0x440] sm:$0xff]
        %v506 = vld [vmem:[%s258 + $0x448] sm:$0xff]
        %v507 = vld [vmem:[%s258 + $0x450] sm:$0xff]
        %v508 = vld [vmem:[%s258 + $0x458] sm:$0xff]
        %v509 = vld [vmem:[%s258 + $0x460] sm:$0xff]
        %v510 = vld [vmem:[%s258 + $0x468] sm:$0xff]
        %v511 = vld [vmem:[%s258 + $0x470] sm:$0xff]
        %v512 = vld [vmem:[%s258 + $0x478] sm:$0xff]
        %v513 = vld [vmem:[%s258 + $0x480] sm:$0xff]
        %v514 = vld [vmem:[%s258 + $0x488] sm:$0xff]
        %v515 = vld [vmem:[%s258 + $0x490] sm:$0xff]
        %v516 = vld [vmem:[%s258 + $0x498] sm:$0xff]
        %v517 = vld [vmem:[%s258 + $0x4a0] sm:$0xff]
        %v518 = vld [vmem:[%s258 + $0x4a8] sm:$0xff]
        %v519 = vld [vmem:[%s258 + $0x4b0] sm:$0xff]
        %v520 = vld [vmem:[%s258 + $0x4b8] sm:$0xff]
        %v521 = vld [vmem:[%s258 + $0x4c0] sm:$0xff]
        %v522 = vld [vmem:[%s258 + $0x4c8] sm:$0xff]
        %v523 = vld [vmem:[%s258 + $0x4d0] sm:$0xff]
        %v524 = vld [vmem:[%s258 + $0x4d8] sm:$0xff]
        %v525 = vld [vmem:[%s258 + $0x4e0] sm:$0xff]
        %v526 = vld [vmem:[%s258 + $0x4e8] sm:$0xff]
        %v527 = vld [vmem:[%s258 + $0x4f0] sm:$0xff]
        %v528 = vld [vmem:[%s258 + $0x4f8] sm:$0xff]
        %v529 = vld [vmem:[%s258 + $0x500] sm:$0xff]
        %v530 = vld [vmem:[%s258 + $0x508] sm:$0xff]
        %v531 = vld [vmem:[%s258 + $0x510] sm:$0xff]
        %v532 = vld [vmem:[%s258 + $0x518] sm:$0xff]
        %v533 = vld [vmem:[%s258 + $0x520] sm:$0xff]
        %v534 = vld [vmem:[%s258 + $0x528] sm:$0xff]
        %v535 = vld [vmem:[%s258 + $0x530] sm:$0xff]
        %v536 = vld [vmem:[%s258 + $0x538] sm:$0xff]
        %v537 = vld [vmem:[%s258 + $0x540] sm:$0xff]
        %v538 = vld [vmem:[%s258 + $0x548] sm:$0xff]
        %v539 = vld [vmem:[%s258 + $0x550] sm:$0xff]
        %v540 = vld [vmem:[%s258 + $0x558] sm:$0xff]
        %v541 = vld [vmem:[%s258 + $0x560] sm:$0xff]
        %v542 = vld [vmem:[%s258 + $0x568] sm:$0xff]
        %v543 = vld [vmem:[%s258 + $0x570] sm:$0xff]
        %v544 = vld [vmem:[%s258 + $0x578] sm:$0xff]
        %v545 = vld [vmem:[%s258 + $0x580] sm:$0xff]
        %v546 = vld [vmem:[%s258 + $0x588] sm:$0xff]
        %v547 = vld [vmem:[%s258 + $0x590] sm:$0xff]
        %v548 = vld [vmem:[%s258 + $0x598] sm:$0xff]
        %v549 = vld [vmem:[%s258 + $0x5a0] sm:$0xff]
        %v550 = vld [vmem:[%s258 + $0x5a8] sm:$0xff]
        %v551 = vld [vmem:[%s258 + $0x5b0] sm:$0xff]
        %v552 = vld [vmem:[%s258 + $0x5b8] sm:$0xff]
        %v553 = vld [vmem:[%s258 + $0x5c0] sm:$0xff]
        %v554 = vld [vmem:[%s258 + $0x5c8] sm:$0xff]
        %v555 = vld [vmem:[%s258 + $0x5d0] sm:$0xff]
        %v556 = vld [vmem:[%s258 + $0x5d8] sm:$0xff]
        %v557 = vld [vmem:[%s258 + $0x5e0] sm:$0xff]
        %v558 = vld [vmem:[%s258 + $0x5e8] sm:$0xff]
        %v559 = vld [vmem:[%s258 + $0x5f0] sm:$0xff]
        %v560 = vld [vmem:[%s258 + $0x5f8] sm:$0xff]
        %v561 = vld [vmem:[%s258 + $0x600] sm:$0xff]
        %v562 = vld [vmem:[%s258 + $0x608] sm:$0xff]
        %v563 = vld [vmem:[%s258 + $0x610] sm:$0xff]
        %v564 = vld [vmem:[%s258 + $0x618] sm:$0xff]
        %v565 = vld [vmem:[%s258 + $0x620] sm:$0xff]
        %v566 = vld [vmem:[%s258 + $0x628] sm:$0xff]
        %v567 = vld [vmem:[%s258 + $0x630] sm:$0xff]
        %v568 = vld [vmem:[%s258 + $0x638] sm:$0xff]
        %v569 = vld [vmem:[%s258 + $0x640] sm:$0xff]
        %v570 = vld [vmem:[%s258 + $0x648] sm:$0xff]
        %v571 = vld [vmem:[%s258 + $0x650] sm:$0xff]
        %v572 = vld [vmem:[%s258 + $0x658] sm:$0xff]
        %v573 = vld [vmem:[%s258 + $0x660] sm:$0xff]
        %v574 = vld [vmem:[%s258 + $0x668] sm:$0xff]
        %v575 = vld [vmem:[%s258 + $0x670] sm:$0xff]
        %v576 = vld [vmem:[%s258 + $0x678] sm:$0xff]
        %v577 = vld [vmem:[%s258 + $0x680] sm:$0xff]
        %v578 = vld [vmem:[%s258 + $0x688] sm:$0xff]
        %v579 = vld [vmem:[%s258 + $0x690] sm:$0xff]
        %v580 = vld [vmem:[%s258 + $0x698] sm:$0xff]
        %v581 = vld [vmem:[%s258 + $0x6a0] sm:$0xff]
        %v582 = vld [vmem:[%s258 + $0x6a8] sm:$0xff]
        %v583 = vld [vmem:[%s258 + $0x6b0] sm:$0xff]
        %v584 = vld [vmem:[%s258 + $0x6b8] sm:$0xff]
        %v585 = vld [vmem:[%s258 + $0x6c0] sm:$0xff]
        %v586 = vld [vmem:[%s258 + $0x6c8] sm:$0xff]
        %v587 = vld [vmem:[%s258 + $0x6d0] sm:$0xff]
        %v588 = vld [vmem:[%s258 + $0x6d8] sm:$0xff]
        %v589 = vld [vmem:[%s258 + $0x6e0] sm:$0xff]
        %v590 = vld [vmem:[%s258 + $0x6e8] sm:$0xff]
        %v591 = vld [vmem:[%s258 + $0x6f0] sm:$0xff]
        %v592 = vld [vmem:[%s258 + $0x6f8] sm:$0xff]
        %v593 = vld [vmem:[%s258 + $0x700] sm:$0xff]
        %v594 = vld [vmem:[%s258 + $0x708] sm:$0xff]
        %v595 = vld [vmem:[%s258 + $0x710] sm:$0xff]
        %v596 = vld [vmem:[%s258 + $0x718] sm:$0xff]
        %v597 = vld [vmem:[%s258 + $0x720] sm:$0xff]
        %v598 = vld [vmem:[%s258 + $0x728] sm:$0xff]
        %v599 = vld [vmem:[%s258 + $0x730] sm:$0xff]
        %v600 = vld [vmem:[%s258 + $0x738] sm:$0xff]
        %v601 = vld [vmem:[%s258 + $0x740] sm:$0xff]
        %v602 = vld [vmem:[%s258 + $0x748] sm:$0xff]
        %v603 = vld [vmem:[%s258 + $0x750] sm:$0xff]
        %v604 = vld [vmem:[%s258 + $0x758] sm:$0xff]
        %v605 = vld [vmem:[%s258 + $0x760] sm:$0xff]
        %v606 = vld [vmem:[%s258 + $0x768] sm:$0xff]
        %v607 = vld [vmem:[%s258 + $0x770] sm:$0xff]
        %v608 = vld [vmem:[%s258 + $0x778] sm:$0xff]
        %v609 = vld [vmem:[%s258 + $0x780] sm:$0xff]
        %v610 = vld [vmem:[%s258 + $0x788] sm:$0xff]
        %v611 = vld [vmem:[%s258 + $0x790] sm:$0xff]
        %v612 = vld [vmem:[%s258 + $0x798] sm:$0xff]
        %v613 = vld [vmem:[%s258 + $0x7a0] sm:$0xff]
        %v614 = vld [vmem:[%s258 + $0x7a8] sm:$0xff]
        %v615 = vld [vmem:[%s258 + $0x7b0] sm:$0xff]
        %v616 = vld [vmem:[%s258 + $0x7b8] sm:$0xff]
        %v617 = vld [vmem:[%s258 + $0x7c0] sm:$0xff]
        %v618 = vld [vmem:[%s258 + $0x7c8] sm:$0xff]
        %v619 = vld [vmem:[%s258 + $0x7d0] sm:$0xff]
        %v620 = vld [vmem:[%s258 + $0x7d8] sm:$0xff]
        %v621 = vld [vmem:[%s258 + $0x7e0] sm:$0xff]
        %v622 = vld [vmem:[%s258 + $0x7e8] sm:$0xff]
        %v623 = vld [vmem:[%s258 + $0x7f0] sm:$0xff]
        %v624 = vld [vmem:[%s258 + $0x7f8] sm:$0xff]
        %v625 = vld [vmem:[%s258 + $0x800] sm:$0xff]
        %v626 = vld [vmem:[%s258 + $0x808] sm:$0xff]
        %v627 = vld [vmem:[%s258 + $0x810] sm:$0xff]
        %v628 = vld [vmem:[%s258 + $0x818] sm:$0xff]
        %v629 = vld [vmem:[%s258 + $0x820] sm:$0xff]
        %v630 = vld [vmem:[%s258 + $0x828] sm:$0xff]
        %v631 = vld [vmem:[%s258 + $0x830] sm:$0xff]
        %v632 = vld [vmem:[%s258 + $0x838] sm:$0xff]
        %v633 = vld [vmem:[%s258 + $0x840] sm:$0xff]
        %v634 = vld [vmem:[%s258 + $0x848] sm:$0xff]
        %v635 = vld [vmem:[%s258 + $0x850] sm:$0xff]
        %v636 = vld [vmem:[%s258 + $0x858] sm:$0xff]
        %v637 = vld [vmem:[%s258 + $0x860] sm:$0xff]
        %v638 = vld [vmem:[%s258 + $0x868] sm:$0xff]
        %v639 = vld [vmem:[%s258 + $0x870] sm:$0xff]
        %v640 = vld [vmem:[%s258 + $0x878] sm:$0xff]
        %v641 = vld [vmem:[%s258 + $0x880] sm:$0xff]
        %v642 = vld [vmem:[%s258 + $0x888] sm:$0xff]
        %v643 = vld [vmem:[%s258 + $0x890] sm:$0xff]
        %v644 = vld [vmem:[%s258 + $0x898] sm:$0xff]
        %v645 = vld [vmem:[%s258 + $0x8a0] sm:$0xff]
        %v646 = vld [vmem:[%s258 + $0x8a8] sm:$0xff]
        %v647 = vld [vmem:[%s258 + $0x8b0] sm:$0xff]
        %v648 = vld [vmem:[%s258 + $0x8b8] sm:$0xff]
        %v649 = vld [vmem:[%s258 + $0x8c0] sm:$0xff]
        %v650 = vld [vmem:[%s258 + $0x8c8] sm:$0xff]
        %v651 = vld [vmem:[%s258 + $0x8d0] sm:$0xff]
        %v652 = vld [vmem:[%s258 + $0x8d8] sm:$0xff]
        %v653 = vld [vmem:[%s258 + $0x8e0] sm:$0xff]
        %v654 = vld [vmem:[%s258 + $0x8e8] sm:$0xff]
        %v655 = vld [vmem:[%s258 + $0x8f0] sm:$0xff]
        %v656 = vld [vmem:[%s258 + $0x8f8] sm:$0xff]
        %v657 = vld [vmem:[%s258 + $0x900] sm:$0xff]
        %v658 = vld [vmem:[%s258 + $0x908] sm:$0xff]
        %v659 = vld [vmem:[%s258 + $0x910] sm:$0xff]
        %v660 = vld [vmem:[%s258 + $0x918] sm:$0xff]
        %v661 = vld [vmem:[%s258 + $0x920] sm:$0xff]
        %v662 = vld [vmem:[%s258 + $0x928] sm:$0xff]
        %v663 = vld [vmem:[%s258 + $0x930] sm:$0xff]
        %v664 = vld [vmem:[%s258 + $0x938] sm:$0xff]
        %v665 = vld [vmem:[%s258 + $0x940] sm:$0xff]
        %v666 = vld [vmem:[%s258 + $0x948] sm:$0xff]
        %v667 = vld [vmem:[%s258 + $0x950] sm:$0xff]
        %v668 = vld [vmem:[%s258 + $0x958] sm:$0xff]
        %v669 = vld [vmem:[%s258 + $0x960] sm:$0xff]
        %v670 = vld [vmem:[%s258 + $0x968] sm:$0xff]
        %v671 = vld [vmem:[%s258 + $0x970] sm:$0xff]
        %v672 = vld [vmem:[%s258 + $0x978] sm:$0xff]
        %v673 = vld [vmem:[%s258 + $0x980] sm:$0xff]
        %v674 = vld [vmem:[%s258 + $0x988] sm:$0xff]
        %v675 = vld [vmem:[%s258 + $0x990] sm:$0xff]
        %v676 = vld [vmem:[%s258 + $0x998] sm:$0xff]
        %v677 = vld [vmem:[%s258 + $0x9a0] sm:$0xff]
        %v678 = vld [vmem:[%s258 + $0x9a8] sm:$0xff]
        %v679 = vld [vmem:[%s258 + $0x9b0] sm:$0xff]
        %v680 = vld [vmem:[%s258 + $0x9b8] sm:$0xff]
        %v681 = vld [vmem:[%s258 + $0x9c0] sm:$0xff]
        %v682 = vld [vmem:[%s258 + $0x9c8] sm:$0xff]
        %v683 = vld [vmem:[%s258 + $0x9d0] sm:$0xff]
        %v684 = vld [vmem:[%s258 + $0x9d8] sm:$0xff]
        %v685 = vld [vmem:[%s258 + $0x9e0] sm:$0xff]
        %v686 = vld [vmem:[%s258 + $0x9e8] sm:$0xff]
        %v687 = vld [vmem:[%s258 + $0x9f0] sm:$0xff]
        %v688 = vld [vmem:[%s258 + $0x9f8] sm:$0xff]
        %v689 = vld [vmem:[%s258 + $0xa00] sm:$0xff]
        %v690 = vld [vmem:[%s258 + $0xa08] sm:$0xff]
        %v691 = vld [vmem:[%s258 + $0xa10] sm:$0xff]
        %v692 = vld [vmem:[%s258 + $0xa18] sm:$0xff]
        %v693 = vld [vmem:[%s258 + $0xa20] sm:$0xff]
        %v694 = vld [vmem:[%s258 + $0xa28] sm:$0xff]
        %v695 = vld [vmem:[%s258 + $0xa30] sm:$0xff]
        %v696 = vld [vmem:[%s258 + $0xa38] sm:$0xff]
        %v697 = vld [vmem:[%s258 + $0xa40] sm:$0xff]
        %v698 = vld [vmem:[%s258 + $0xa48] sm:$0xff]
        %v699 = vld [vmem:[%s258 + $0xa50] sm:$0xff]
        %v700 = vld [vmem:[%s258 + $0xa58] sm:$0xff]
        %v701 = vld [vmem:[%s258 + $0xa60] sm:$0xff]
        %v702 = vld [vmem:[%s258 + $0xa68] sm:$0xff]
        %v703 = vld [vmem:[%s258 + $0xa70] sm:$0xff]
        %v704 = vld [vmem:[%s258 + $0xa78] sm:$0xff]
        %v705 = vld [vmem:[%s258 + $0xa80] sm:$0xff]
        %v706 = vld [vmem:[%s258 + $0xa88] sm:$0xff]
        %v707 = vld [vmem:[%s258 + $0xa90] sm:$0xff]
        %v708 = vld [vmem:[%s258 + $0xa98] sm:$0xff]
        %v709 = vld [vmem:[%s258 + $0xaa0] sm:$0xff]
        %v710 = vld [vmem:[%s258 + $0xaa8] sm:$0xff]
        %v711 = vld [vmem:[%s258 + $0xab0] sm:$0xff]
        %v712 = vld [vmem:[%s258 + $0xab8] sm:$0xff]
        %v713 = vld [vmem:[%s258 + $0xac0] sm:$0xff]
        %v714 = vld [vmem:[%s258 + $0xac8] sm:$0xff]
        %v715 = vld [vmem:[%s258 + $0xad0] sm:$0xff]
        %v716 = vld [vmem:[%s258 + $0xad8] sm:$0xff]
        %v717 = vld [vmem:[%s258 + $0xae0] sm:$0xff]
        %v718 = vld [vmem:[%s258 + $0xae8] sm:$0xff]
        %v719 = vld [vmem:[%s258 + $0xaf0] sm:$0xff]
        %v720 = vld [vmem:[%s258 + $0xaf8] sm:$0xff]
        %v721 = vld [vmem:[%s258 + $0xb00] sm:$0xff]
        %v722 = vld [vmem:[%s258 + $0xb08] sm:$0xff]
        %v723 = vld [vmem:[%s258 + $0xb10] sm:$0xff]
        %v724 = vld [vmem:[%s258 + $0xb18] sm:$0xff]
        %v725 = vld [vmem:[%s258 + $0xb20] sm:$0xff]
        %v726 = vld [vmem:[%s258 + $0xb28] sm:$0xff]
        %v727 = vld [vmem:[%s258 + $0xb30] sm:$0xff]
        %v728 = vld [vmem:[%s258 + $0xb38] sm:$0xff]
        %v729 = vld [vmem:[%s258 + $0xb40] sm:$0xff]
        %v730 = vld [vmem:[%s258 + $0xb48] sm:$0xff]
        %v731 = vld [vmem:[%s258 + $0xb50] sm:$0xff]
        %v732 = vld [vmem:[%s258 + $0xb58] sm:$0xff]
        %v733 = vld [vmem:[%s258 + $0xb60] sm:$0xff]
        %v734 = vld [vmem:[%s258 + $0xb68] sm:$0xff]
        %v735 = vld [vmem:[%s258 + $0xb70] sm:$0xff]
        %v736 = vld [vmem:[%s258 + $0xb78] sm:$0xff]
        %v737 = vld [vmem:[%s258 + $0xb80] sm:$0xff]
        %v738 = vld [vmem:[%s258 + $0xb88] sm:$0xff]
        %v739 = vld [vmem:[%s258 + $0xb90] sm:$0xff]
        %v740 = vld [vmem:[%s258 + $0xb98] sm:$0xff]
        %v741 = vld [vmem:[%s258 + $0xba0] sm:$0xff]
        %v742 = vld [vmem:[%s258 + $0xba8] sm:$0xff]
        %v743 = vld [vmem:[%s258 + $0xbb0] sm:$0xff]
        %v744 = vld [vmem:[%s258 + $0xbb8] sm:$0xff]
        %v745 = vld [vmem:[%s258 + $0xbc0] sm:$0xff]
        %v746 = vld [vmem:[%s258 + $0xbc8] sm:$0xff]
        %v747 = vld [vmem:[%s258 + $0xbd0] sm:$0xff]
        %v748 = vld [vmem:[%s258 + $0xbd8] sm:$0xff]
        %v749 = vld [vmem:[%s258 + $0xbe0] sm:$0xff]
        %v750 = vld [vmem:[%s258 + $0xbe8] sm:$0xff]
        %v751 = vld [vmem:[%s258 + $0xbf0] sm:$0xff]
        %v752 = vld [vmem:[%s258 + $0xbf8] sm:$0xff]
        %v753 = vld [vmem:[%s258 + $0xc00] sm:$0xff]
        %v754 = vld [vmem:[%s258 + $0xc08] sm:$0xff]
        %v755 = vld [vmem:[%s258 + $0xc10] sm:$0xff]
        %v756 = vld [vmem:[%s258 + $0xc18] sm:$0xff]
        %v757 = vld [vmem:[%s258 + $0xc20] sm:$0xff]
        %v758 = vld [vmem:[%s258 + $0xc28] sm:$0xff]
        %v759 = vld [vmem:[%s258 + $0xc30] sm:$0xff]
        %v760 = vld [vmem:[%s258 + $0xc38] sm:$0xff]
        %v761 = vld [vmem:[%s258 + $0xc40] sm:$0xff]
        %v762 = vld [vmem:[%s258 + $0xc48] sm:$0xff]
        %v763 = vld [vmem:[%s258 + $0xc50] sm:$0xff]
        %v764 = vld [vmem:[%s258 + $0xc58] sm:$0xff]
        %v765 = vld [vmem:[%s258 + $0xc60] sm:$0xff]
        %v766 = vld [vmem:[%s258 + $0xc68] sm:$0xff]
        %v767 = vld [vmem:[%s258 + $0xc70] sm:$0xff]
        %v768 = vld [vmem:[%s258 + $0xc78] sm:$0xff]
        %v769 = vld [vmem:[%s258 + $0xc80] sm:$0xff]
        %v770 = vld [vmem:[%s258 + $0xc88] sm:$0xff]
        %v771 = vld [vmem:[%s258 + $0xc90] sm:$0xff]
        %v772 = vld [vmem:[%s258 + $0xc98] sm:$0xff]
        %v773 = vld [vmem:[%s258 + $0xca0] sm:$0xff]
        %v774 = vld [vmem:[%s258 + $0xca8] sm:$0xff]
        %v775 = vld [vmem:[%s258 + $0xcb0] sm:$0xff]
        %v776 = vld [vmem:[%s258 + $0xcb8] sm:$0xff]
        %v777 = vld [vmem:[%s258 + $0xcc0] sm:$0xff]
        %v778 = vld [vmem:[%s258 + $0xcc8] sm:$0xff]
        %v779 = vld [vmem:[%s258 + $0xcd0] sm:$0xff]
        %v780 = vld [vmem:[%s258 + $0xcd8] sm:$0xff]
        %v781 = vld [vmem:[%s258 + $0xce0] sm:$0xff]
        %v782 = vld [vmem:[%s258 + $0xce8] sm:$0xff]
        %v783 = vld [vmem:[%s258 + $0xcf0] sm:$0xff]
        %v784 = vld [vmem:[%s258 + $0xcf8] sm:$0xff]
        %v785 = vld [vmem:[%s258 + $0xd00] sm:$0xff]
        %v786 = vld [vmem:[%s258 + $0xd08] sm:$0xff]
        %v787 = vld [vmem:[%s258 + $0xd10] sm:$0xff]
        %v788 = vld [vmem:[%s258 + $0xd18] sm:$0xff]
        %v789 = vld [vmem:[%s258 + $0xd20] sm:$0xff]
        %v790 = vld [vmem:[%s258 + $0xd28] sm:$0xff]
        %v791 = vld [vmem:[%s258 + $0xd30] sm:$0xff]
        %v792 = vld [vmem:[%s258 + $0xd38] sm:$0xff]
        %v793 = vld [vmem:[%s258 + $0xd40] sm:$0xff]
        %v794 = vld [vmem:[%s258 + $0xd48] sm:$0xff]
        %v795 = vld [vmem:[%s258 + $0xd50] sm:$0xff]
        %v796 = vld [vmem:[%s258 + $0xd58] sm:$0xff]
        %v797 = vld [vmem:[%s258 + $0xd60] sm:$0xff]
        %v798 = vld [vmem:[%s258 + $0xd68] sm:$0xff]
        %v799 = vld [vmem:[%s258 + $0xd70] sm:$0xff]
        %v800 = vld [vmem:[%s258 + $0xd78] sm:$0xff]
        %v801 = vld [vmem:[%s258 + $0xd80] sm:$0xff]
        %v802 = vld [vmem:[%s258 + $0xd88] sm:$0xff]
        %v803 = vld [vmem:[%s258 + $0xd90] sm:$0xff]
        %v804 = vld [vmem:[%s258 + $0xd98] sm:$0xff]
        %v805 = vld [vmem:[%s258 + $0xda0] sm:$0xff]
        %v806 = vld [vmem:[%s258 + $0xda8] sm:$0xff]
        %v807 = vld [vmem:[%s258 + $0xdb0] sm:$0xff]
        %v808 = vld [vmem:[%s258 + $0xdb8] sm:$0xff]
        %v809 = vld [vmem:[%s258 + $0xdc0] sm:$0xff]
        %v810 = vld [vmem:[%s258 + $0xdc8] sm:$0xff]
        %v811 = vld [vmem:[%s258 + $0xdd0] sm:$0xff]
        %v812 = vld [vmem:[%s258 + $0xdd8] sm:$0xff]
        %v813 = vld [vmem:[%s258 + $0xde0] sm:$0xff]
        %v814 = vld [vmem:[%s258 + $0xde8] sm:$0xff]
        %v815 = vld [vmem:[%s258 + $0xdf0] sm:$0xff]
        %v816 = vld [vmem:[%s258 + $0xdf8] sm:$0xff]
        %v817 = vld [vmem:[%s258 + $0xe00] sm:$0xff]
        %v818 = vld [vmem:[%s258 + $0xe08] sm:$0xff]
        %v819 = vld [vmem:[%s258 + $0xe10] sm:$0xff]
        %v820 = vld [vmem:[%s258 + $0xe18] sm:$0xff]
        %v821 = vld [vmem:[%s258 + $0xe20] sm:$0xff]
        %v822 = vld [vmem:[%s258 + $0xe28] sm:$0xff]
        %v823 = vld [vmem:[%s258 + $0xe30] sm:$0xff]
        %v824 = vld [vmem:[%s258 + $0xe38] sm:$0xff]
        %v825 = vld [vmem:[%s258 + $0xe40] sm:$0xff]
        %v826 = vld [vmem:[%s258 + $0xe48] sm:$0xff]
        %v827 = vld [vmem:[%s258 + $0xe50] sm:$0xff]
        %v828 = vld [vmem:[%s258 + $0xe58] sm:$0xff]
        %v829 = vld [vmem:[%s258 + $0xe60] sm:$0xff]
        %v830 = vld [vmem:[%s258 + $0xe68] sm:$0xff]
        %v831 = vld [vmem:[%s258 + $0xe70] sm:$0xff]
        %v832 = vld [vmem:[%s258 + $0xe78] sm:$0xff]
        %v833 = vld [vmem:[%s258 + $0xe80] sm:$0xff]
        %v834 = vld [vmem:[%s258 + $0xe88] sm:$0xff]
        %v835 = vld [vmem:[%s258 + $0xe90] sm:$0xff]
        %v836 = vld [vmem:[%s258 + $0xe98] sm:$0xff]
        %v837 = vld [vmem:[%s258 + $0xea0] sm:$0xff]
        %v838 = vld [vmem:[%s258 + $0xea8] sm:$0xff]
        %v839 = vld [vmem:[%s258 + $0xeb0] sm:$0xff]
        %v840 = vld [vmem:[%s258 + $0xeb8] sm:$0xff]
        %v841 = vld [vmem:[%s258 + $0xec0] sm:$0xff]
        %v842 = vld [vmem:[%s258 + $0xec8] sm:$0xff]
        %v843 = vld [vmem:[%s258 + $0xed0] sm:$0xff]
        %v844 = vld [vmem:[%s258 + $0xed8] sm:$0xff]
        %v845 = vld [vmem:[%s258 + $0xee0] sm:$0xff]
        %v846 = vld [vmem:[%s258 + $0xee8] sm:$0xff]
        %v847 = vld [vmem:[%s258 + $0xef0] sm:$0xff]
        %v848 = vld [vmem:[%s258 + $0xef8] sm:$0xff]
        %v849 = vld [vmem:[%s258 + $0xf00] sm:$0xff]
        %v850 = vld [vmem:[%s258 + $0xf08] sm:$0xff]
        %v851 = vld [vmem:[%s258 + $0xf10] sm:$0xff]
        %v852 = vld [vmem:[%s258 + $0xf18] sm:$0xff]
        %v853 = vld [vmem:[%s258 + $0xf20] sm:$0xff]
        %v854 = vld [vmem:[%s258 + $0xf28] sm:$0xff]
        %v855 = vld [vmem:[%s258 + $0xf30] sm:$0xff]
        %v856 = vld [vmem:[%s258 + $0xf38] sm:$0xff]
        %v857 = vld [vmem:[%s258 + $0xf40] sm:$0xff]
        %v858 = vld [vmem:[%s258 + $0xf48] sm:$0xff]
        %v859 = vld [vmem:[%s258 + $0xf50] sm:$0xff]
        %v860 = vld [vmem:[%s258 + $0xf58] sm:$0xff]
        %v861 = vld [vmem:[%s258 + $0xf60] sm:$0xff]
        %v862 = vld [vmem:[%s258 + $0xf68] sm:$0xff]
        %v863 = vld [vmem:[%s258 + $0xf70] sm:$0xff]
        %v864 = vld [vmem:[%s258 + $0xf78] sm:$0xff]
        %v865 = vld [vmem:[%s258 + $0xf80] sm:$0xff]
        %v866 = vld [vmem:[%s258 + $0xf88] sm:$0xff]
        %v867 = vld [vmem:[%s258 + $0xf90] sm:$0xff]
        %v868 = vld [vmem:[%s258 + $0xf98] sm:$0xff]
        %v869 = vld [vmem:[%s258 + $0xfa0] sm:$0xff]
        %v870 = vld [vmem:[%s258 + $0xfa8] sm:$0xff]
        %v871 = vld [vmem:[%s258 + $0xfb0] sm:$0xff]
        %v872 = vld [vmem:[%s258 + $0xfb8] sm:$0xff]
        %v873 = vld [vmem:[%s258 + $0xfc0] sm:$0xff]
        %v874 = vld [vmem:[%s258 + $0xfc8] sm:$0xff]
        %v875 = vld [vmem:[%s258 + $0xfd0] sm:$0xff]
        %v876 = vld [vmem:[%s258 + $0xfd8] sm:$0xff]
        %v877 = vld [vmem:[%s258 + $0xfe0] sm:$0xff]
        %v878 = vld [vmem:[%s258 + $0xfe8] sm:$0xff]
        %v879 = vld [vmem:[%s258 + $0xff0] sm:$0xff]
        %v880 = vld [vmem:[%s258 + $0xff8] sm:$0xff]
        %889 = vst [vmem:[#allocation1] ss:$4 sm:$0xff] %v361
        %s890 = scalar_lea.vmem [#allocation1], 1
        %891 = vst [vmem:[%s890] ss:$4 sm:$0xff] %v363
        %s892 = scalar_lea.vmem [#allocation1], 2
        %893 = vst [vmem:[%s892] ss:$4 sm:$0xff] %v365
        %s894 = scalar_lea.vmem [#allocation1], 3
        %895 = vst [vmem:[%s894] ss:$4 sm:$0xff] %v367
        %s896 = scalar_lea.vmem [#allocation1], 32
        %897 = vst [vmem:[%s896] ss:$4 sm:$0xff] %v362
        %s898 = scalar_lea.vmem [#allocation1], 33
        %899 = vst [vmem:[%s898] ss:$4 sm:$0xff] %v364
        %s900 = scalar_lea.vmem [#allocation1], 34
        %901 = vst [vmem:[%s900] ss:$4 sm:$0xff] %v366
        %s902 = scalar_lea.vmem [#allocation1], 35
        %903 = vst [vmem:[%s902] ss:$4 sm:$0xff] %v368
        %v904 = vld.sshfl [vmem:[#allocation1] sm:$0xff pattern:$0x73625140]
        %v905 = vld.sshfl [vmem:[#allocation1 + $0x8] sm:$0xff pattern:$0x73625140]
        %v906 = vld.sshfl [vmem:[#allocation1 + $0x10] sm:$0xff pattern:$0x73625140]
        %v907 = vld.sshfl [vmem:[#allocation1 + $0x18] sm:$0xff pattern:$0x73625140]
        %v908 = vld.sshfl [vmem:[#allocation1 + $0x20] sm:$0xff pattern:$0x73625140]
        %v909 = vld.sshfl [vmem:[#allocation1 + $0x28] sm:$0xff pattern:$0x73625140]
        %v910 = vld.sshfl [vmem:[#allocation1 + $0x30] sm:$0xff pattern:$0x73625140]
        %v911 = vld.sshfl [vmem:[#allocation1 + $0x38] sm:$0xff pattern:$0x73625140]
        %920 = vmatpush.xpose.msra.mxu0 %v489
        %921 = vmatpush.xpose.msra.mxu0 %v481
        %922 = vmatpush.xpose.msra.mxu0 %v473
        %923 = vmatpush.xpose.msra.mxu0 %v465
        %924 = vmatpush.xpose.msra.mxu0 %v457
        %925 = vmatpush.xpose.msra.mxu0 %v449
        %926 = vmatpush.xpose.msra.mxu0 %v441
        %927 = vmatpush.xpose.msra.mxu0 %v433
        %928 = vmatpush.xpose.msra.mxu0 %v425
        %929 = vmatpush.xpose.msra.mxu0 %v417
        %930 = vmatpush.xpose.msra.mxu0 %v409
        %931 = vmatpush.xpose.msra.mxu0 %v401
        %932 = vmatpush.xpose.msra.mxu0 %v393
        %933 = vmatpush.xpose.msra.mxu0 %v385
        %934 = vmatpush.xpose.msra.mxu0 %v377
        %935 = vmatpush.xpose.msra.mxu0 %v369
        %936 = vmatmul.f32.gmra.mxu0 %v904
        %v937 = vpop.f32.mrf.mxu0
        %v938 = vadd.f32 0.0, %v937
        %939 = vdwg.mxu0
        %940 = vmatpush.xpose.msra.mxu0 %v490
        %941 = vmatpush.xpose.msra.mxu0 %v482
        %942 = vmatpush.xpose.msra.mxu0 %v474
        %943 = vmatpush.xpose.msra.mxu0 %v466
        %944 = vmatpush.xpose.msra.mxu0 %v458
        %945 = vmatpush.xpose.msra.mxu0 %v450
        %946 = vmatpush.xpose.msra.mxu0 %v442
        %947 = vmatpush.xpose.msra.mxu0 %v434
        %948 = vmatpush.xpose.msra.mxu0 %v426
        %949 = vmatpush.xpose.msra.mxu0 %v418
        %950 = vmatpush.xpose.msra.mxu0 %v410
        %951 = vmatpush.xpose.msra.mxu0 %v402
        %952 = vmatpush.xpose.msra.mxu0 %v394
        %953 = vmatpush.xpose.msra.mxu0 %v386
        %954 = vmatpush.xpose.msra.mxu0 %v378
        %955 = vmatpush.xpose.msra.mxu0 %v370
        %956 = vmatmul.f32.gmra.mxu0 %v905
        %v957 = vpop.f32.mrf.mxu0
        %v958 = vadd.f32 %v938, %v957
        %959 = vdwg.mxu0
        %960 = vmatpush.xpose.msra.mxu0 %v491
        %961 = vmatpush.xpose.msra.mxu0 %v483
        %962 = vmatpush.xpose.msra.mxu0 %v475
        %963 = vmatpush.xpose.msra.mxu0 %v467
        %964 = vmatpush.xpose.msra.mxu0 %v459
        %965 = vmatpush.xpose.msra.mxu0 %v451
        %966 = vmatpush.xpose.msra.mxu0 %v443
        %967 = vmatpush.xpose.msra.mxu0 %v435
        %968 = vmatpush.xpose.msra.mxu0 %v427
        %969 = vmatpush.xpose.msra.mxu0 %v419
        %970 = vmatpush.xpose.msra.mxu0 %v411
        %971 = vmatpush.xpose.msra.mxu0 %v403
        %972 = vmatpush.xpose.msra.mxu0 %v395
        %973 = vmatpush.xpose.msra.mxu0 %v387
        %974 = vmatpush.xpose.msra.mxu0 %v379
        %975 = vmatpush.xpose.msra.mxu0 %v371
        %976 = vmatmul.f32.gmra.mxu0 %v906
        %v977 = vpop.f32.mrf.mxu0
        %v978 = vadd.f32 %v958, %v977
        %979 = vdwg.mxu0
        %980 = vmatpush.xpose.msra.mxu0 %v492
        %981 = vmatpush.xpose.msra.mxu0 %v484
        %982 = vmatpush.xpose.msra.mxu0 %v476
        %983 = vmatpush.xpose.msra.mxu0 %v468
        %984 = vmatpush.xpose.msra.mxu0 %v460
        %985 = vmatpush.xpose.msra.mxu0 %v452
        %986 = vmatpush.xpose.msra.mxu0 %v444
        %987 = vmatpush.xpose.msra.mxu0 %v436
        %988 = vmatpush.xpose.msra.mxu0 %v428
        %989 = vmatpush.xpose.msra.mxu0 %v420
        %990 = vmatpush.xpose.msra.mxu0 %v412
        %991 = vmatpush.xpose.msra.mxu0 %v404
        %992 = vmatpush.xpose.msra.mxu0 %v396
        %993 = vmatpush.xpose.msra.mxu0 %v388
        %994 = vmatpush.xpose.msra.mxu0 %v380
        %995 = vmatpush.xpose.msra.mxu0 %v372
        %996 = vmatmul.f32.gmra.mxu0 %v907
        %v997 = vpop.f32.mrf.mxu0
        %v998 = vadd.f32 %v978, %v997
        %999 = vdwg.mxu0
        %1000 = vmatpush.xpose.msra.mxu0 %v493
        %1001 = vmatpush.xpose.msra.mxu0 %v485
        %1002 = vmatpush.xpose.msra.mxu0 %v477
        %1003 = vmatpush.xpose.msra.mxu0 %v469
        %1004 = vmatpush.xpose.msra.mxu0 %v461
        %1005 = vmatpush.xpose.msra.mxu0 %v453
        %1006 = vmatpush.xpose.msra.mxu0 %v445
        %1007 = vmatpush.xpose.msra.mxu0 %v437
        %1008 = vmatpush.xpose.msra.mxu0 %v429
        %1009 = vmatpush.xpose.msra.mxu0 %v421
        %1010 = vmatpush.xpose.msra.mxu0 %v413
        %1011 = vmatpush.xpose.msra.mxu0 %v405
        %1012 = vmatpush.xpose.msra.mxu0 %v397
        %1013 = vmatpush.xpose.msra.mxu0 %v389
        %1014 = vmatpush.xpose.msra.mxu0 %v381
        %1015 = vmatpush.xpose.msra.mxu0 %v373
        %1016 = vmatmul.f32.gmra.mxu0 %v908
        %v1017 = vpop.f32.mrf.mxu0
        %v1018 = vadd.f32 %v998, %v1017
        %1019 = vdwg.mxu0
        %1020 = vmatpush.xpose.msra.mxu0 %v494
        %1021 = vmatpush.xpose.msra.mxu0 %v486
        %1022 = vmatpush.xpose.msra.mxu0 %v478
        %1023 = vmatpush.xpose.msra.mxu0 %v470
        %1024 = vmatpush.xpose.msra.mxu0 %v462
        %1025 = vmatpush.xpose.msra.mxu0 %v454
        %1026 = vmatpush.xpose.msra.mxu0 %v446
        %1027 = vmatpush.xpose.msra.mxu0 %v438
        %1028 = vmatpush.xpose.msra.mxu0 %v430
        %1029 = vmatpush.xpose.msra.mxu0 %v422
        %1030 = vmatpush.xpose.msra.mxu0 %v414
        %1031 = vmatpush.xpose.msra.mxu0 %v406
        %1032 = vmatpush.xpose.msra.mxu0 %v398
        %1033 = vmatpush.xpose.msra.mxu0 %v390
        %1034 = vmatpush.xpose.msra.mxu0 %v382
        %1035 = vmatpush.xpose.msra.mxu0 %v374
        %1036 = vmatmul.f32.gmra.mxu0 %v909
        %v1037 = vpop.f32.mrf.mxu0
        %v1038 = vadd.f32 %v1018, %v1037
        %1039 = vdwg.mxu0
        %1040 = vmatpush.xpose.msra.mxu0 %v495
        %1041 = vmatpush.xpose.msra.mxu0 %v487
        %1042 = vmatpush.xpose.msra.mxu0 %v479
        %1043 = vmatpush.xpose.msra.mxu0 %v471
        %1044 = vmatpush.xpose.msra.mxu0 %v463
        %1045 = vmatpush.xpose.msra.mxu0 %v455
        %1046 = vmatpush.xpose.msra.mxu0 %v447
        %1047 = vmatpush.xpose.msra.mxu0 %v439
        %1048 = vmatpush.xpose.msra.mxu0 %v431
        %1049 = vmatpush.xpose.msra.mxu0 %v423
        %1050 = vmatpush.xpose.msra.mxu0 %v415
        %1051 = vmatpush.xpose.msra.mxu0 %v407
        %1052 = vmatpush.xpose.msra.mxu0 %v399
        %1053 = vmatpush.xpose.msra.mxu0 %v391
        %1054 = vmatpush.xpose.msra.mxu0 %v383
        %1055 = vmatpush.xpose.msra.mxu0 %v375
        %1056 = vmatmul.f32.gmra.mxu0 %v910
        %v1057 = vpop.f32.mrf.mxu0
        %v1058 = vadd.f32 %v1038, %v1057
        %1059 = vdwg.mxu0
        %1060 = vmatpush.xpose.msra.mxu0 %v496
        %1061 = vmatpush.xpose.msra.mxu0 %v488
        %1062 = vmatpush.xpose.msra.mxu0 %v480
        %1063 = vmatpush.xpose.msra.mxu0 %v472
        %1064 = vmatpush.xpose.msra.mxu0 %v464
        %1065 = vmatpush.xpose.msra.mxu0 %v456
        %1066 = vmatpush.xpose.msra.mxu0 %v448
        %1067 = vmatpush.xpose.msra.mxu0 %v440
        %1068 = vmatpush.xpose.msra.mxu0 %v432
        %1069 = vmatpush.xpose.msra.mxu0 %v424
        %1070 = vmatpush.xpose.msra.mxu0 %v416
        %1071 = vmatpush.xpose.msra.mxu0 %v408
        %1072 = vmatpush.xpose.msra.mxu0 %v400
        %1073 = vmatpush.xpose.msra.mxu0 %v392
        %1074 = vmatpush.xpose.msra.mxu0 %v384
        %1075 = vmatpush.xpose.msra.mxu0 %v376
        %1076 = vmatmul.f32.gmra.mxu0 %v911
        %v1077 = vpop.f32.mrf.mxu0
        %v1078 = vadd.f32 %v1058, %v1077
        %1079 = vdwg.mxu0
        %1080 = vmatpush.xpose.msra.mxu0 %v617
        %1081 = vmatpush.xpose.msra.mxu0 %v609
        %1082 = vmatpush.xpose.msra.mxu0 %v601
        %1083 = vmatpush.xpose.msra.mxu0 %v593
        %1084 = vmatpush.xpose.msra.mxu0 %v585
        %1085 = vmatpush.xpose.msra.mxu0 %v577
        %1086 = vmatpush.xpose.msra.mxu0 %v569
        %1087 = vmatpush.xpose.msra.mxu0 %v561
        %1088 = vmatpush.xpose.msra.mxu0 %v553
        %1089 = vmatpush.xpose.msra.mxu0 %v545
        %1090 = vmatpush.xpose.msra.mxu0 %v537
        %1091 = vmatpush.xpose.msra.mxu0 %v529
        %1092 = vmatpush.xpose.msra.mxu0 %v521
        %1093 = vmatpush.xpose.msra.mxu0 %v513
        %1094 = vmatpush.xpose.msra.mxu0 %v505
        %1095 = vmatpush.xpose.msra.mxu0 %v497
        %1096 = vmatmul.f32.gmra.mxu0 %v904
        %v1097 = vpop.f32.mrf.mxu0
        %v1098 = vadd.f32 0.0, %v1097
        %1099 = vdwg.mxu0
        %1100 = vmatpush.xpose.msra.mxu0 %v618
        %1101 = vmatpush.xpose.msra.mxu0 %v610
        %1102 = vmatpush.xpose.msra.mxu0 %v602
        %1103 = vmatpush.xpose.msra.mxu0 %v594
        %1104 = vmatpush.xpose.msra.mxu0 %v586
        %1105 = vmatpush.xpose.msra.mxu0 %v578
        %1106 = vmatpush.xpose.msra.mxu0 %v570
        %1107 = vmatpush.xpose.msra.mxu0 %v562
        %1108 = vmatpush.xpose.msra.mxu0 %v554
        %1109 = vmatpush.xpose.msra.mxu0 %v546
        %1110 = vmatpush.xpose.msra.mxu0 %v538
        %1111 = vmatpush.xpose.msra.mxu0 %v530
        %1112 = vmatpush.xpose.msra.mxu0 %v522
        %1113 = vmatpush.xpose.msra.mxu0 %v514
        %1114 = vmatpush.xpose.msra.mxu0 %v506
        %1115 = vmatpush.xpose.msra.mxu0 %v498
        %1116 = vmatmul.f32.gmra.mxu0 %v905
        %v1117 = vpop.f32.mrf.mxu0
        %v1118 = vadd.f32 %v1098, %v1117
        %1119 = vdwg.mxu0
        %1120 = vmatpush.xpose.msra.mxu0 %v619
        %1121 = vmatpush.xpose.msra.mxu0 %v611
        %1122 = vmatpush.xpose.msra.mxu0 %v603
        %1123 = vmatpush.xpose.msra.mxu0 %v595
        %1124 = vmatpush.xpose.msra.mxu0 %v587
        %1125 = vmatpush.xpose.msra.mxu0 %v579
        %1126 = vmatpush.xpose.msra.mxu0 %v571
        %1127 = vmatpush.xpose.msra.mxu0 %v563
        %1128 = vmatpush.xpose.msra.mxu0 %v555
        %1129 = vmatpush.xpose.msra.mxu0 %v547
        %1130 = vmatpush.xpose.msra.mxu0 %v539
        %1131 = vmatpush.xpose.msra.mxu0 %v531
        %1132 = vmatpush.xpose.msra.mxu0 %v523
        %1133 = vmatpush.xpose.msra.mxu0 %v515
        %1134 = vmatpush.xpose.msra.mxu0 %v507
        %1135 = vmatpush.xpose.msra.mxu0 %v499
        %1136 = vmatmul.f32.gmra.mxu0 %v906
        %v1137 = vpop.f32.mrf.mxu0
        %v1138 = vadd.f32 %v1118, %v1137
        %1139 = vdwg.mxu0
        %1140 = vmatpush.xpose.msra.mxu0 %v620
        %1141 = vmatpush.xpose.msra.mxu0 %v612
        %1142 = vmatpush.xpose.msra.mxu0 %v604
        %1143 = vmatpush.xpose.msra.mxu0 %v596
        %1144 = vmatpush.xpose.msra.mxu0 %v588
        %1145 = vmatpush.xpose.msra.mxu0 %v580
        %1146 = vmatpush.xpose.msra.mxu0 %v572
        %1147 = vmatpush.xpose.msra.mxu0 %v564
        %1148 = vmatpush.xpose.msra.mxu0 %v556
        %1149 = vmatpush.xpose.msra.mxu0 %v548
        %1150 = vmatpush.xpose.msra.mxu0 %v540
        %1151 = vmatpush.xpose.msra.mxu0 %v532
        %1152 = vmatpush.xpose.msra.mxu0 %v524
        %1153 = vmatpush.xpose.msra.mxu0 %v516
        %1154 = vmatpush.xpose.msra.mxu0 %v508
        %1155 = vmatpush.xpose.msra.mxu0 %v500
        %1156 = vmatmul.f32.gmra.mxu0 %v907
        %v1157 = vpop.f32.mrf.mxu0
        %v1158 = vadd.f32 %v1138, %v1157
        %1159 = vdwg.mxu0
        %1160 = vmatpush.xpose.msra.mxu0 %v621
        %1161 = vmatpush.xpose.msra.mxu0 %v613
        %1162 = vmatpush.xpose.msra.mxu0 %v605
        %1163 = vmatpush.xpose.msra.mxu0 %v597
        %1164 = vmatpush.xpose.msra.mxu0 %v589
        %1165 = vmatpush.xpose.msra.mxu0 %v581
        %1166 = vmatpush.xpose.msra.mxu0 %v573
        %1167 = vmatpush.xpose.msra.mxu0 %v565
        %1168 = vmatpush.xpose.msra.mxu0 %v557
        %1169 = vmatpush.xpose.msra.mxu0 %v549
        %1170 = vmatpush.xpose.msra.mxu0 %v541
        %1171 = vmatpush.xpose.msra.mxu0 %v533
        %1172 = vmatpush.xpose.msra.mxu0 %v525
        %1173 = vmatpush.xpose.msra.mxu0 %v517
        %1174 = vmatpush.xpose.msra.mxu0 %v509
        %1175 = vmatpush.xpose.msra.mxu0 %v501
        %1176 = vmatmul.f32.gmra.mxu0 %v908
        %v1177 = vpop.f32.mrf.mxu0
        %v1178 = vadd.f32 %v1158, %v1177
        %1179 = vdwg.mxu0
        %1180 = vmatpush.xpose.msra.mxu0 %v622
        %1181 = vmatpush.xpose.msra.mxu0 %v614
        %1182 = vmatpush.xpose.msra.mxu0 %v606
        %1183 = vmatpush.xpose.msra.mxu0 %v598
        %1184 = vmatpush.xpose.msra.mxu0 %v590
        %1185 = vmatpush.xpose.msra.mxu0 %v582
        %1186 = vmatpush.xpose.msra.mxu0 %v574
        %1187 = vmatpush.xpose.msra.mxu0 %v566
        %1188 = vmatpush.xpose.msra.mxu0 %v558
        %1189 = vmatpush.xpose.msra.mxu0 %v550
        %1190 = vmatpush.xpose.msra.mxu0 %v542
        %1191 = vmatpush.xpose.msra.mxu0 %v534
        %1192 = vmatpush.xpose.msra.mxu0 %v526
        %1193 = vmatpush.xpose.msra.mxu0 %v518
        %1194 = vmatpush.xpose.msra.mxu0 %v510
        %1195 = vmatpush.xpose.msra.mxu0 %v502
        %1196 = vmatmul.f32.gmra.mxu0 %v909
        %v1197 = vpop.f32.mrf.mxu0
        %v1198 = vadd.f32 %v1178, %v1197
        %1199 = vdwg.mxu0
        %1200 = vmatpush.xpose.msra.mxu0 %v623
        %1201 = vmatpush.xpose.msra.mxu0 %v615
        %1202 = vmatpush.xpose.msra.mxu0 %v607
        %1203 = vmatpush.xpose.msra.mxu0 %v599
        %1204 = vmatpush.xpose.msra.mxu0 %v591
        %1205 = vmatpush.xpose.msra.mxu0 %v583
        %1206 = vmatpush.xpose.msra.mxu0 %v575
        %1207 = vmatpush.xpose.msra.mxu0 %v567
        %1208 = vmatpush.xpose.msra.mxu0 %v559
        %1209 = vmatpush.xpose.msra.mxu0 %v551
        %1210 = vmatpush.xpose.msra.mxu0 %v543
        %1211 = vmatpush.xpose.msra.mxu0 %v535
        %1212 = vmatpush.xpose.msra.mxu0 %v527
        %1213 = vmatpush.xpose.msra.mxu0 %v519
        %1214 = vmatpush.xpose.msra.mxu0 %v511
        %1215 = vmatpush.xpose.msra.mxu0 %v503
        %1216 = vmatmul.f32.gmra.mxu0 %v910
        %v1217 = vpop.f32.mrf.mxu0
        %v1218 = vadd.f32 %v1198, %v1217
        %1219 = vdwg.mxu0
        %1220 = vmatpush.xpose.msra.mxu0 %v624
        %1221 = vmatpush.xpose.msra.mxu0 %v616
        %1222 = vmatpush.xpose.msra.mxu0 %v608
        %1223 = vmatpush.xpose.msra.mxu0 %v600
        %1224 = vmatpush.xpose.msra.mxu0 %v592
        %1225 = vmatpush.xpose.msra.mxu0 %v584
        %1226 = vmatpush.xpose.msra.mxu0 %v576
        %1227 = vmatpush.xpose.msra.mxu0 %v568
        %1228 = vmatpush.xpose.msra.mxu0 %v560
        %1229 = vmatpush.xpose.msra.mxu0 %v552
        %1230 = vmatpush.xpose.msra.mxu0 %v544
        %1231 = vmatpush.xpose.msra.mxu0 %v536
        %1232 = vmatpush.xpose.msra.mxu0 %v528
        %1233 = vmatpush.xpose.msra.mxu0 %v520
        %1234 = vmatpush.xpose.msra.mxu0 %v512
        %1235 = vmatpush.xpose.msra.mxu0 %v504
        %1236 = vmatmul.f32.gmra.mxu0 %v911
        %v1237 = vpop.f32.mrf.mxu0
        %v1238 = vadd.f32 %v1218, %v1237
        %1239 = vdwg.mxu0
        %1240 = vmatpush.xpose.msra.mxu0 %v745
        %1241 = vmatpush.xpose.msra.mxu0 %v737
        %1242 = vmatpush.xpose.msra.mxu0 %v729
        %1243 = vmatpush.xpose.msra.mxu0 %v721
        %1244 = vmatpush.xpose.msra.mxu0 %v713
        %1245 = vmatpush.xpose.msra.mxu0 %v705
        %1246 = vmatpush.xpose.msra.mxu0 %v697
        %1247 = vmatpush.xpose.msra.mxu0 %v689
        %1248 = vmatpush.xpose.msra.mxu0 %v681
        %1249 = vmatpush.xpose.msra.mxu0 %v673
        %1250 = vmatpush.xpose.msra.mxu0 %v665
        %1251 = vmatpush.xpose.msra.mxu0 %v657
        %1252 = vmatpush.xpose.msra.mxu0 %v649
        %1253 = vmatpush.xpose.msra.mxu0 %v641
        %1254 = vmatpush.xpose.msra.mxu0 %v633
        %1255 = vmatpush.xpose.msra.mxu0 %v625
        %1256 = vmatmul.f32.gmra.mxu0 %v904
        %v1257 = vpop.f32.mrf.mxu0
        %v1258 = vadd.f32 0.0, %v1257
        %1259 = vdwg.mxu0
        %1260 = vmatpush.xpose.msra.mxu0 %v746
        %1261 = vmatpush.xpose.msra.mxu0 %v738
        %1262 = vmatpush.xpose.msra.mxu0 %v730
        %1263 = vmatpush.xpose.msra.mxu0 %v722
        %1264 = vmatpush.xpose.msra.mxu0 %v714
        %1265 = vmatpush.xpose.msra.mxu0 %v706
        %1266 = vmatpush.xpose.msra.mxu0 %v698
        %1267 = vmatpush.xpose.msra.mxu0 %v690
        %1268 = vmatpush.xpose.msra.mxu0 %v682
        %1269 = vmatpush.xpose.msra.mxu0 %v674
        %1270 = vmatpush.xpose.msra.mxu0 %v666
        %1271 = vmatpush.xpose.msra.mxu0 %v658
        %1272 = vmatpush.xpose.msra.mxu0 %v650
        %1273 = vmatpush.xpose.msra.mxu0 %v642
        %1274 = vmatpush.xpose.msra.mxu0 %v634
        %1275 = vmatpush.xpose.msra.mxu0 %v626
        %1276 = vmatmul.f32.gmra.mxu0 %v905
        %v1277 = vpop.f32.mrf.mxu0
        %v1278 = vadd.f32 %v1258, %v1277
        %1279 = vdwg.mxu0
        %1280 = vmatpush.xpose.msra.mxu0 %v747
        %1281 = vmatpush.xpose.msra.mxu0 %v739
        %1282 = vmatpush.xpose.msra.mxu0 %v731
        %1283 = vmatpush.xpose.msra.mxu0 %v723
        %1284 = vmatpush.xpose.msra.mxu0 %v715
        %1285 = vmatpush.xpose.msra.mxu0 %v707
        %1286 = vmatpush.xpose.msra.mxu0 %v699
        %1287 = vmatpush.xpose.msra.mxu0 %v691
        %1288 = vmatpush.xpose.msra.mxu0 %v683
        %1289 = vmatpush.xpose.msra.mxu0 %v675
        %1290 = vmatpush.xpose.msra.mxu0 %v667
        %1291 = vmatpush.xpose.msra.mxu0 %v659
        %1292 = vmatpush.xpose.msra.mxu0 %v651
        %1293 = vmatpush.xpose.msra.mxu0 %v643
        %1294 = vmatpush.xpose.msra.mxu0 %v635
        %1295 = vmatpush.xpose.msra.mxu0 %v627
        %1296 = vmatmul.f32.gmra.mxu0 %v906
        %v1297 = vpop.f32.mrf.mxu0
        %v1298 = vadd.f32 %v1278, %v1297
        %1299 = vdwg.mxu0
        %1300 = vmatpush.xpose.msra.mxu0 %v748
        %1301 = vmatpush.xpose.msra.mxu0 %v740
        %1302 = vmatpush.xpose.msra.mxu0 %v732
        %1303 = vmatpush.xpose.msra.mxu0 %v724
        %1304 = vmatpush.xpose.msra.mxu0 %v716
        %1305 = vmatpush.xpose.msra.mxu0 %v708
        %1306 = vmatpush.xpose.msra.mxu0 %v700
        %1307 = vmatpush.xpose.msra.mxu0 %v692
        %1308 = vmatpush.xpose.msra.mxu0 %v684
        %1309 = vmatpush.xpose.msra.mxu0 %v676
        %1310 = vmatpush.xpose.msra.mxu0 %v668
        %1311 = vmatpush.xpose.msra.mxu0 %v660
        %1312 = vmatpush.xpose.msra.mxu0 %v652
        %1313 = vmatpush.xpose.msra.mxu0 %v644
        %1314 = vmatpush.xpose.msra.mxu0 %v636
        %1315 = vmatpush.xpose.msra.mxu0 %v628
        %1316 = vmatmul.f32.gmra.mxu0 %v907
        %v1317 = vpop.f32.mrf.mxu0
        %v1318 = vadd.f32 %v1298, %v1317
        %1319 = vdwg.mxu0
        %1320 = vmatpush.xpose.msra.mxu0 %v749
        %1321 = vmatpush.xpose.msra.mxu0 %v741
        %1322 = vmatpush.xpose.msra.mxu0 %v733
        %1323 = vmatpush.xpose.msra.mxu0 %v725
        %1324 = vmatpush.xpose.msra.mxu0 %v717
        %1325 = vmatpush.xpose.msra.mxu0 %v709
        %1326 = vmatpush.xpose.msra.mxu0 %v701
        %1327 = vmatpush.xpose.msra.mxu0 %v693
        %1328 = vmatpush.xpose.msra.mxu0 %v685
        %1329 = vmatpush.xpose.msra.mxu0 %v677
        %1330 = vmatpush.xpose.msra.mxu0 %v669
        %1331 = vmatpush.xpose.msra.mxu0 %v661
        %1332 = vmatpush.xpose.msra.mxu0 %v653
        %1333 = vmatpush.xpose.msra.mxu0 %v645
        %1334 = vmatpush.xpose.msra.mxu0 %v637
        %1335 = vmatpush.xpose.msra.mxu0 %v629
        %1336 = vmatmul.f32.gmra.mxu0 %v908
        %v1337 = vpop.f32.mrf.mxu0
        %v1338 = vadd.f32 %v1318, %v1337
        %1339 = vdwg.mxu0
        %1340 = vmatpush.xpose.msra.mxu0 %v750
        %1341 = vmatpush.xpose.msra.mxu0 %v742
        %1342 = vmatpush.xpose.msra.mxu0 %v734
        %1343 = vmatpush.xpose.msra.mxu0 %v726
        %1344 = vmatpush.xpose.msra.mxu0 %v718
        %1345 = vmatpush.xpose.msra.mxu0 %v710
        %1346 = vmatpush.xpose.msra.mxu0 %v702
        %1347 = vmatpush.xpose.msra.mxu0 %v694
        %1348 = vmatpush.xpose.msra.mxu0 %v686
        %1349 = vmatpush.xpose.msra.mxu0 %v678
        %1350 = vmatpush.xpose.msra.mxu0 %v670
        %1351 = vmatpush.xpose.msra.mxu0 %v662
        %1352 = vmatpush.xpose.msra.mxu0 %v654
        %1353 = vmatpush.xpose.msra.mxu0 %v646
        %1354 = vmatpush.xpose.msra.mxu0 %v638
        %1355 = vmatpush.xpose.msra.mxu0 %v630
        %1356 = vmatmul.f32.gmra.mxu0 %v909
        %v1357 = vpop.f32.mrf.mxu0
        %v1358 = vadd.f32 %v1338, %v1357
        %1359 = vdwg.mxu0
        %1360 = vmatpush.xpose.msra.mxu0 %v751
        %1361 = vmatpush.xpose.msra.mxu0 %v743
        %1362 = vmatpush.xpose.msra.mxu0 %v735
        %1363 = vmatpush.xpose.msra.mxu0 %v727
        %1364 = vmatpush.xpose.msra.mxu0 %v719
        %1365 = vmatpush.xpose.msra.mxu0 %v711
        %1366 = vmatpush.xpose.msra.mxu0 %v703
        %1367 = vmatpush.xpose.msra.mxu0 %v695
        %1368 = vmatpush.xpose.msra.mxu0 %v687
        %1369 = vmatpush.xpose.msra.mxu0 %v679
        %1370 = vmatpush.xpose.msra.mxu0 %v671
        %1371 = vmatpush.xpose.msra.mxu0 %v663
        %1372 = vmatpush.xpose.msra.mxu0 %v655
        %1373 = vmatpush.xpose.msra.mxu0 %v647
        %1374 = vmatpush.xpose.msra.mxu0 %v639
        %1375 = vmatpush.xpose.msra.mxu0 %v631
        %1376 = vmatmul.f32.gmra.mxu0 %v910
        %v1377 = vpop.f32.mrf.mxu0
        %v1378 = vadd.f32 %v1358, %v1377
        %1379 = vdwg.mxu0
        %1380 = vmatpush.xpose.msra.mxu0 %v752
        %1381 = vmatpush.xpose.msra.mxu0 %v744
        %1382 = vmatpush.xpose.msra.mxu0 %v736
        %1383 = vmatpush.xpose.msra.mxu0 %v728
        %1384 = vmatpush.xpose.msra.mxu0 %v720
        %1385 = vmatpush.xpose.msra.mxu0 %v712
        %1386 = vmatpush.xpose.msra.mxu0 %v704
        %1387 = vmatpush.xpose.msra.mxu0 %v696
        %1388 = vmatpush.xpose.msra.mxu0 %v688
        %1389 = vmatpush.xpose.msra.mxu0 %v680
        %1390 = vmatpush.xpose.msra.mxu0 %v672
        %1391 = vmatpush.xpose.msra.mxu0 %v664
        %1392 = vmatpush.xpose.msra.mxu0 %v656
        %1393 = vmatpush.xpose.msra.mxu0 %v648
        %1394 = vmatpush.xpose.msra.mxu0 %v640
        %1395 = vmatpush.xpose.msra.mxu0 %v632
        %1396 = vmatmul.f32.gmra.mxu0 %v911
        %v1397 = vpop.f32.mrf.mxu0
        %v1398 = vadd.f32 %v1378, %v1397
        %1399 = vdwg.mxu0
        %1400 = vmatpush.xpose.msra.mxu0 %v873
        %1401 = vmatpush.xpose.msra.mxu0 %v865
        %1402 = vmatpush.xpose.msra.mxu0 %v857
        %1403 = vmatpush.xpose.msra.mxu0 %v849
        %1404 = vmatpush.xpose.msra.mxu0 %v841
        %1405 = vmatpush.xpose.msra.mxu0 %v833
        %1406 = vmatpush.xpose.msra.mxu0 %v825
        %1407 = vmatpush.xpose.msra.mxu0 %v817
        %1408 = vmatpush.xpose.msra.mxu0 %v809
        %1409 = vmatpush.xpose.msra.mxu0 %v801
        %1410 = vmatpush.xpose.msra.mxu0 %v793
        %1411 = vmatpush.xpose.msra.mxu0 %v785
        %1412 = vmatpush.xpose.msra.mxu0 %v777
        %1413 = vmatpush.xpose.msra.mxu0 %v769
        %1414 = vmatpush.xpose.msra.mxu0 %v761
        %1415 = vmatpush.xpose.msra.mxu0 %v753
        %1416 = vmatmul.f32.gmra.mxu0 %v904
        %v1417 = vpop.f32.mrf.mxu0
        %v1418 = vadd.f32 0.0, %v1417
        %1419 = vdwg.mxu0
        %1420 = vmatpush.xpose.msra.mxu0 %v874
        %1421 = vmatpush.xpose.msra.mxu0 %v866
        %1422 = vmatpush.xpose.msra.mxu0 %v858
        %1423 = vmatpush.xpose.msra.mxu0 %v850
        %1424 = vmatpush.xpose.msra.mxu0 %v842
        %1425 = vmatpush.xpose.msra.mxu0 %v834
        %1426 = vmatpush.xpose.msra.mxu0 %v826
        %1427 = vmatpush.xpose.msra.mxu0 %v818
        %1428 = vmatpush.xpose.msra.mxu0 %v810
        %1429 = vmatpush.xpose.msra.mxu0 %v802
        %1430 = vmatpush.xpose.msra.mxu0 %v794
        %1431 = vmatpush.xpose.msra.mxu0 %v786
        %1432 = vmatpush.xpose.msra.mxu0 %v778
        %1433 = vmatpush.xpose.msra.mxu0 %v770
        %1434 = vmatpush.xpose.msra.mxu0 %v762
        %1435 = vmatpush.xpose.msra.mxu0 %v754
        %1436 = vmatmul.f32.gmra.mxu0 %v905
        %v1437 = vpop.f32.mrf.mxu0
        %v1438 = vadd.f32 %v1418, %v1437
        %1439 = vdwg.mxu0
        %1440 = vmatpush.xpose.msra.mxu0 %v875
        %1441 = vmatpush.xpose.msra.mxu0 %v867
        %1442 = vmatpush.xpose.msra.mxu0 %v859
        %1443 = vmatpush.xpose.msra.mxu0 %v851
        %1444 = vmatpush.xpose.msra.mxu0 %v843
        %1445 = vmatpush.xpose.msra.mxu0 %v835
        %1446 = vmatpush.xpose.msra.mxu0 %v827
        %1447 = vmatpush.xpose.msra.mxu0 %v819
        %1448 = vmatpush.xpose.msra.mxu0 %v811
        %1449 = vmatpush.xpose.msra.mxu0 %v803
        %1450 = vmatpush.xpose.msra.mxu0 %v795
        %1451 = vmatpush.xpose.msra.mxu0 %v787
        %1452 = vmatpush.xpose.msra.mxu0 %v779
        %1453 = vmatpush.xpose.msra.mxu0 %v771
        %1454 = vmatpush.xpose.msra.mxu0 %v763
        %1455 = vmatpush.xpose.msra.mxu0 %v755
        %1456 = vmatmul.f32.gmra.mxu0 %v906
        %v1457 = vpop.f32.mrf.mxu0
        %v1458 = vadd.f32 %v1438, %v1457
        %1459 = vdwg.mxu0
        %1460 = vmatpush.xpose.msra.mxu0 %v876
        %1461 = vmatpush.xpose.msra.mxu0 %v868
        %1462 = vmatpush.xpose.msra.mxu0 %v860
        %1463 = vmatpush.xpose.msra.mxu0 %v852
        %1464 = vmatpush.xpose.msra.mxu0 %v844
        %1465 = vmatpush.xpose.msra.mxu0 %v836
        %1466 = vmatpush.xpose.msra.mxu0 %v828
        %1467 = vmatpush.xpose.msra.mxu0 %v820
        %1468 = vmatpush.xpose.msra.mxu0 %v812
        %1469 = vmatpush.xpose.msra.mxu0 %v804
        %1470 = vmatpush.xpose.msra.mxu0 %v796
        %1471 = vmatpush.xpose.msra.mxu0 %v788
        %1472 = vmatpush.xpose.msra.mxu0 %v780
        %1473 = vmatpush.xpose.msra.mxu0 %v772
        %1474 = vmatpush.xpose.msra.mxu0 %v764
        %1475 = vmatpush.xpose.msra.mxu0 %v756
        %1476 = vmatmul.f32.gmra.mxu0 %v907
        %v1477 = vpop.f32.mrf.mxu0
        %v1478 = vadd.f32 %v1458, %v1477
        %1479 = vdwg.mxu0
        %1480 = vmatpush.xpose.msra.mxu0 %v877
        %1481 = vmatpush.xpose.msra.mxu0 %v869
        %1482 = vmatpush.xpose.msra.mxu0 %v861
        %1483 = vmatpush.xpose.msra.mxu0 %v853
        %1484 = vmatpush.xpose.msra.mxu0 %v845
        %1485 = vmatpush.xpose.msra.mxu0 %v837
        %1486 = vmatpush.xpose.msra.mxu0 %v829
        %1487 = vmatpush.xpose.msra.mxu0 %v821
        %1488 = vmatpush.xpose.msra.mxu0 %v813
        %1489 = vmatpush.xpose.msra.mxu0 %v805
        %1490 = vmatpush.xpose.msra.mxu0 %v797
        %1491 = vmatpush.xpose.msra.mxu0 %v789
        %1492 = vmatpush.xpose.msra.mxu0 %v781
        %1493 = vmatpush.xpose.msra.mxu0 %v773
        %1494 = vmatpush.xpose.msra.mxu0 %v765
        %1495 = vmatpush.xpose.msra.mxu0 %v757
        %1496 = vmatmul.f32.gmra.mxu0 %v908
        %v1497 = vpop.f32.mrf.mxu0
        %v1498 = vadd.f32 %v1478, %v1497
        %1499 = vdwg.mxu0
        %1500 = vmatpush.xpose.msra.mxu0 %v878
        %1501 = vmatpush.xpose.msra.mxu0 %v870
        %1502 = vmatpush.xpose.msra.mxu0 %v862
        %1503 = vmatpush.xpose.msra.mxu0 %v854
        %1504 = vmatpush.xpose.msra.mxu0 %v846
        %1505 = vmatpush.xpose.msra.mxu0 %v838
        %1506 = vmatpush.xpose.msra.mxu0 %v830
        %1507 = vmatpush.xpose.msra.mxu0 %v822
        %1508 = vmatpush.xpose.msra.mxu0 %v814
        %1509 = vmatpush.xpose.msra.mxu0 %v806
        %1510 = vmatpush.xpose.msra.mxu0 %v798
        %1511 = vmatpush.xpose.msra.mxu0 %v790
        %1512 = vmatpush.xpose.msra.mxu0 %v782
        %1513 = vmatpush.xpose.msra.mxu0 %v774
        %1514 = vmatpush.xpose.msra.mxu0 %v766
        %1515 = vmatpush.xpose.msra.mxu0 %v758
        %1516 = vmatmul.f32.gmra.mxu0 %v909
        %v1517 = vpop.f32.mrf.mxu0
        %v1518 = vadd.f32 %v1498, %v1517
        %1519 = vdwg.mxu0
        %1520 = vmatpush.xpose.msra.mxu0 %v879
        %1521 = vmatpush.xpose.msra.mxu0 %v871
        %1522 = vmatpush.xpose.msra.mxu0 %v863
        %1523 = vmatpush.xpose.msra.mxu0 %v855
        %1524 = vmatpush.xpose.msra.mxu0 %v847
        %1525 = vmatpush.xpose.msra.mxu0 %v839
        %1526 = vmatpush.xpose.msra.mxu0 %v831
        %1527 = vmatpush.xpose.msra.mxu0 %v823
        %1528 = vmatpush.xpose.msra.mxu0 %v815
        %1529 = vmatpush.xpose.msra.mxu0 %v807
        %1530 = vmatpush.xpose.msra.mxu0 %v799
        %1531 = vmatpush.xpose.msra.mxu0 %v791
        %1532 = vmatpush.xpose.msra.mxu0 %v783
        %1533 = vmatpush.xpose.msra.mxu0 %v775
        %1534 = vmatpush.xpose.msra.mxu0 %v767
        %1535 = vmatpush.xpose.msra.mxu0 %v759
        %1536 = vmatmul.f32.gmra.mxu0 %v910
        %v1537 = vpop.f32.mrf.mxu0
        %v1538 = vadd.f32 %v1518, %v1537
        %1539 = vdwg.mxu0
        %1540 = vmatpush.xpose.msra.mxu0 %v880
        %1541 = vmatpush.xpose.msra.mxu0 %v872
        %1542 = vmatpush.xpose.msra.mxu0 %v864
        %1543 = vmatpush.xpose.msra.mxu0 %v856
        %1544 = vmatpush.xpose.msra.mxu0 %v848
        %1545 = vmatpush.xpose.msra.mxu0 %v840
        %1546 = vmatpush.xpose.msra.mxu0 %v832
        %1547 = vmatpush.xpose.msra.mxu0 %v824
        %1548 = vmatpush.xpose.msra.mxu0 %v816
        %1549 = vmatpush.xpose.msra.mxu0 %v808
        %1550 = vmatpush.xpose.msra.mxu0 %v800
        %1551 = vmatpush.xpose.msra.mxu0 %v792
        %1552 = vmatpush.xpose.msra.mxu0 %v784
        %1553 = vmatpush.xpose.msra.mxu0 %v776
        %1554 = vmatpush.xpose.msra.mxu0 %v768
        %1555 = vmatpush.xpose.msra.mxu0 %v760
        %1556 = vmatmul.f32.gmra.mxu0 %v911
        %v1557 = vpop.f32.mrf.mxu0
        %v1558 = vadd.f32 %v1538, %v1557
        %1559 = vdwg.mxu0
        %v1564 = vrot.slane %v1238, 6
        %v1565 = vrot.slane %v1398, 4
        %v1566 = vrot.slane %v1558, 2
        %vm1567 = vcmask 1041408
        %v1568 = vsel %vm1567, %v1078, %v1564
        %vm1569 = vcmask 1045508
        %v1570 = vsel %vm1569, %v1565, %v1566
        %vm1571 = vcmask 1043456
        %v1572 = vsel %vm1571, %v1568, %v1570
        %vm1573 = vcmask 1043458
        %v1574 = vsel %vm1573, %v1078, %v1564
        %vm1575 = vcmask 1045504
        %v1576 = vsel %vm1575, %v1566, %v1565
        %vm1577 = vcmask 1045506
        %v1578 = vsel %vm1577, %v1574, %v1576
        %v1579 = vrot.slane %v1578, 2
        %v1580 = vsel %vm1569, %v1078, %v1564
        %v1581 = vsel %vm1567, %v1565, %v1566
        %v1582 = vsel %vm1571, %v1581, %v1580
        %v1583 = vrot.slane %v1582, 4
        %v1584 = vsel %vm1575, %v1564, %v1078
        %v1585 = vsel %vm1573, %v1565, %v1566
        %v1586 = vsel %vm1577, %v1585, %v1584
        %v1587 = vrot.slane %v1586, 6
        %v1592 = vadd.f32 %v357, %v1572
        %v1593 = vadd.f32 %v358, %v1579
        %v1594 = vadd.f32 %v359, %v1583
        %v1595 = vadd.f32 %v360, %v1587
        %1596 = vst [vmem:[%s296] sm:$0xff] %v1592
        %1597 = vst [vmem:[%s296 + $0x8] sm:$0xff] %v1593
        %1598 = vst [vmem:[%s296 + $0x10] sm:$0xff] %v1594
        %1599 = vst [vmem:[%s296 + $0x18] sm:$0xff] %v1595
        %s1600 = sand.u32 %s132, 1
        %s1601 = scalar_lea.sflag [#allocation4], %s1600
        %s1602 = sand.u32 %s132, 1
        %s1603 = smul.addr %s1602, 32
        %s1604 = scalar_lea.vmem [#allocation8], %s1603
        // Predicated region
        $region49: #{tpu_custom_call.1} parent=31 // pred_check
          %p1605 = pneg %p142
        $region50: #{tpu_custom_call.1} parent=31 // pred_check_branch
          %1607 = sbr.rel (%p1605) target = $region52
        $region51: #{tpu_custom_call.1} parent=31 // pred_region
          %s1608 = smul.u32 4, %s26
          %s1609 = smul.u32 4, %s27
          %s1610 = ssub.s32 1, %s1608
          %s1611 = smul.u32 2, %s1610
          %s1612 = smul.u32 %s1611, 4
          %s1613 = ssub.s32 32, %s1612
          %s1614 = sshll.u32 %s1613, 4
          %1615 = vsyncadd %s1601, %s1614
          %p1616 = scmp.ne.s32.totalorder 0, %s1612
          %s1617 = smul.addr %s1608, 8
          %s1618 = sadd.s32 %s1609, %s1617
          %s1619 = smul.addr %s1618, 2
          %s1620 = scalar_lea.hbm %s3, %s1619
          %s1621 = smul.u32 8, %s1610
          %s1622 = sshll.u32 %s1604, 4
          %s1623 = int_to_ptr.vmem [resolvable:$true] %s1622
          %s1624 = sshll.u32 %s1620, 4
          %s1625 = int_to_ptr.hbm [resolvable:$true] %s1624
          %s1626 = sshll.u32 %s1621, 4
          %1630 = dma.vmem_to_hbm [thread:$0]  (%p1616), %s1623, %s1626, %s1625, %s1601, 128, 256, 8
        $region52: #{tpu_custom_call.1} parent=31 // pred_fallthru
          _
      $region32: #{tpu_custom_call.1} parent=5 // pred_fallthru
        _
      %p1631 = scmp.le.s32.totalorder 2, %s16
      // Predicated region
      $region53: #{tpu_custom_call.1} parent=5 // pred_check
        %p1632 = pneg %p1631
      $region54: #{tpu_custom_call.1} parent=5 // pred_check_branch
        %1634 = sbr.rel (%p1632) target = $region56
      $region55: #{tpu_custom_call.1} parent=5 // pred_region
        %s1635 = ssub.s32 %s16, 2
        // Predicated region
        $region57: #{tpu_custom_call.1} parent=55 // pred_check
          %p1636 = pneg %p148
        $region58: #{tpu_custom_call.1} parent=55 // pred_check_branch
          %1638 = sbr.rel (%p1636) target = $region60
        $region59: #{tpu_custom_call.1} parent=55 // pred_region
          %s1639 = sand.u32 %s133, 1
          %s1640 = scalar_lea.sflag [#allocation4], %s1639
          %s1641 = sand.u32 %s133, 1
          %s1642 = smul.addr %s1641, 32
          %s1643 = scalar_lea.vmem [#allocation8], %s1642
          %1645 = dma.done %s1640, 512
        $region60: #{tpu_custom_call.1} parent=55 // pred_fallthru
          _
      $region56: #{tpu_custom_call.1} parent=5 // pred_fallthru
        _
    $region6: #{tpu_custom_call.1} parent=1 // loop_footer
      %s20 = sadd.s32 1, %s16
    $region7: #{tpu_custom_call.1} parent=1 // loop_footer_branch
      %15 = sbr.rel target = $region3
    $region8: #{tpu_custom_call.1} parent=1 // loop_exit
      _
    %1646 = vsyncpa [#allocation3], 1
    %s1647 = scalar_lea.sflag [#allocation3], 1
    %1648 = vsyncpa %s1647, 1
    %1649 = vsyncpa [#allocation6], 1
    %s1650 = scalar_lea.sflag [#allocation6], 1
    %1651 = vsyncpa %s1650, 1
    %1652 = vsyncpa [#allocation4], 1
    %s1653 = scalar_lea.sflag [#allocation4], 1
    %1654 = vsyncpa %s1653, 1

</llo_original>
